<compile_context>
chip_gen: v7x
topology: tpu7x:2x2x1
jax: 0.10.0
libtpu: 0.0.40
codegen_flags: <defaults>
</compile_context>

<pallas_src>
import functools
import math

import jax
import jax.numpy as jnp
from jax import lax
from jax.experimental import pallas as pl
from jax.experimental.pallas import tpu as pltpu

BN_EPS = 1e-5


def decoder_kernel(z_ref, w1_ref, b1_ref, wih_ref, whh_ref, bg_ref,
                   gamma_ref, beta_ref, w3_ref, b3_ref, out_ref,
                   *, seq_len, batch_pad, batch):
    # z_ref:     (T*Bp, L) bf16   time-major, batch padded to Bp
    # w1_ref:    (L, H)  bf16     b1_ref: (1, H)  f32
    # wih_ref:   (H, 4H) bf16     whh_ref: (H, 4H) bf16
    # bg_ref:    (1, 4H) f32      (= b_ih + b_hh)
    # gamma_ref: (T,) f32 SMEM    beta_ref: (T,) f32 SMEM
    # w3_ref:    (H, OP) bf16     (OP = out_features padded to 128 lanes)
    # b3_ref:    (1, OP) f32
    # out_ref:   (T*Bp, OP) f32
    T, Bp, B = seq_len, batch_pad, batch
    H = w1_ref.shape[1]

    # ---- hoisted input-side matmuls (2 big MXU ops instead of 2*T tiny ones) ----
    x = jnp.maximum(
        jnp.dot(z_ref[...], w1_ref[...], preferred_element_type=jnp.float32)
        + b1_ref[...], 0.0)                                       # (T*Bp, H) f32
    gx = (jnp.dot(x.astype(jnp.bfloat16), wih_ref[...],
                  preferred_element_type=jnp.float32)
          + bg_ref[...])                                          # (T*Bp, 4H) f32

    whh = whh_ref[...]                                            # hoisted weight loads
    w3 = w3_ref[...]
    b3 = b3_ref[...]

    # lane mask selecting the "g" (tanh) gate block inside the 4H lanes
    lane = lax.broadcasted_iota(jnp.int32, (Bp, 4 * H), 1)
    g_sel = (lane >= 2 * H) & (lane < 3 * H)
    pre_scale = jnp.where(g_sel, 1.0, 0.5)                        # 0.5x for sigmoid lanes

    # sublane mask excluding padded batch rows from BN statistics
    row = lax.broadcasted_iota(jnp.int32, (Bp, H), 0)
    valid = row < B
    inv_n = 1.0 / float(B * H)

    h = jnp.zeros((Bp, H), jnp.float32)
    c = jnp.zeros((Bp, H), jnp.float32)

    # ---- recurrence, fully unrolled (T static and small), fused epilogue ----
    for t in range(T):
        gates = gx[t * Bp:(t + 1) * Bp, :] + jnp.dot(
            h.astype(jnp.bfloat16), whh,
            preferred_element_type=jnp.float32)                   # (Bp, 4H) f32
        # single EUP tanh per step: sigmoid(x) = 0.5*tanh(0.5*x) + 0.5
        tt = jnp.tanh(gates * pre_scale)
        acts = jnp.where(g_sel, tt, 0.5 * tt + 0.5)
        i_g = acts[:, 0 * H:1 * H]
        f_g = acts[:, 1 * H:2 * H]
        g_g = acts[:, 2 * H:3 * H]
        o_g = acts[:, 3 * H:4 * H]
        c = f_g * c + i_g * g_g
        h = o_g * jnp.tanh(c)

        # ---- fused BatchNorm1d (channel = timestep t, training stats) + fc3 ----
        hm = jnp.where(valid, h, 0.0)                             # mask padded rows
        s1 = jnp.sum(jnp.sum(hm, axis=1, keepdims=True),
                     axis=0, keepdims=True)                       # (1,1) sum
        s2 = jnp.sum(jnp.sum(hm * hm, axis=1, keepdims=True),
                     axis=0, keepdims=True)                       # (1,1) sum of squares
        mu = s1 * inv_n
        var = s2 * inv_n - mu * mu                                # biased variance
        scale = lax.rsqrt(var + BN_EPS) * gamma_ref[t]            # gamma folded in
        y = (h - mu) * scale + beta_ref[t]                        # (Bp, H) f32
        out_ref[t * Bp:(t + 1) * Bp, :] = (
            jnp.dot(y.astype(jnp.bfloat16), w3,
                    preferred_element_type=jnp.float32)
            + b3).astype(out_ref.dtype)                           # lane-dense (8,128) store


def prepare_params(params):
    """One-time parameter folding, hoisted out of the per-call forward path:
    bf16 weight casts, combined LSTM bias, lane-dense (128-padded) fc3."""
    H, O = params["w3"].shape
    OP = ((O + 127) // 128) * 128                                 # lane-dense output width
    w3p = jnp.zeros((H, OP), jnp.float32).at[:, :O].set(params["w3"])
    b3p = jnp.zeros((1, OP), jnp.float32).at[:, :O].set(params["b3"])
    return {
        "w1": params["w1"].astype(jnp.bfloat16),
        "b1": params["b1"],
        "wih": params["wih"].astype(jnp.bfloat16),
        "whh": params["whh"].astype(jnp.bfloat16),
        "b_gates": params["bih"] + params["bhh"],
        "gamma": params["gamma"],
        "beta": params["beta"],
        "w3": w3p.astype(jnp.bfloat16),
        "b3": b3p,
    }


@functools.partial(jax.jit, static_argnames=("out_features",))
def timeseries_decoder_forward(z, prep, *, out_features):
    """z: (B, T, latent_dim) float32.  Returns (B, T, out_features) float32."""
    B, T, L = z.shape
    OP = prep["w3"].shape[1]
    Bp = ((B + 7) // 8) * 8                                       # pad batch to sublanes

    # time-major, zero-pad batch, flatten to a 2-D slab (rows grouped by t), bf16 operand
    z_tm = jnp.transpose(z, (1, 0, 2))                            # (T, B, L)
    z_tm = jnp.pad(z_tm, ((0, 0), (0, Bp - B), (0, 0)))
    z_flat = z_tm.reshape(T * Bp, L).astype(jnp.bfloat16)

    kernel = functools.partial(decoder_kernel, seq_len=T, batch_pad=Bp, batch=B)
    vmem = pl.BlockSpec(memory_space=pltpu.MemorySpace.VMEM)
    smem = pl.BlockSpec(memory_space=pltpu.MemorySpace.SMEM)

    out_flat = pl.pallas_call(
        kernel,
        out_shape=jax.ShapeDtypeStruct((T * Bp, OP), jnp.float32),
        in_specs=[vmem, vmem, vmem, vmem, vmem, vmem, smem, smem, vmem, vmem],
        out_specs=vmem,
    )(z_flat, prep["w1"], prep["b1"], prep["wih"], prep["whh"],
      prep["b_gates"], prep["gamma"], prep["beta"], prep["w3"], prep["b3"])

    out = out_flat.reshape(T, Bp, OP)[:, :B, :out_features]       # drop pad rows / lanes
    return jnp.transpose(out, (1, 0, 2))                          # (B, T, O)


def init_params(key, latent_dim, hidden_dim, out_features, seq_len):
    """PyTorch-style uniform init.  Weights stored pre-transposed so the kernel
    computes x @ W (i.e. W here = W_pytorch.T).  gamma/beta randomized so the
    test exercises the BN affine path."""
    def u(k, shape, fan_in):
        bound = 1.0 / math.sqrt(fan_in)
        return jax.random.uniform(k, shape, jnp.float32, -bound, bound)

    ks = jax.random.split(key, 10)
    H = hidden_dim
    return {
        "w1":  u(ks[0], (latent_dim, H), latent_dim),             # fc1.weight.T
        "b1":  u(ks[1], (1, H), latent_dim),                      # fc1.bias
        "wih": u(ks[2], (H, 4 * H), H),                           # lstm.weight_ih_l0.T
        "whh": u(ks[3], (H, 4 * H), H),                           # lstm.weight_hh_l0.T
        "bih": u(ks[4], (1, 4 * H), H),                           # lstm.bias_ih_l0
        "bhh": u(ks[5], (1, 4 * H), H),                           # lstm.bias_hh_l0
        "gamma": jax.random.uniform(ks[6], (seq_len,), jnp.float32, 0.5, 1.5),
        "beta":  jax.random.uniform(ks[7], (seq_len,), jnp.float32, -0.5, 0.5),
        "w3":  u(ks[8], (H, out_features), H),                    # fc3.weight.T
        "b3":  u(ks[9], (1, out_features), H),                    # fc3.bias
    }


def reference_forward(z, p, *, mxu_dtype=jnp.float32):
    """Pure-JAX reference of the same forward pass.  `mxu_dtype=jnp.bfloat16`
    mirrors the kernel's bf16-operand / f32-accumulation matmul precision so
    the comparison isolates structural correctness."""
    B, T, _ = z.shape
    H = p["w1"].shape[1]

    def mm(a, b):
        return jnp.dot(a.astype(mxu_dtype), b.astype(mxu_dtype),
                       preferred_element_type=jnp.float32)

    x = jax.nn.relu(mm(z.reshape(B * T, -1), p["w1"]).reshape(B, T, H) + p["b1"][0])
    h = jnp.zeros((B, H), jnp.float32)
    c = jnp.zeros((B, H), jnp.float32)
    hs = []
    for t in range(T):
        gates = mm(x[:, t], p["wih"]) + p["bih"][0] + mm(h, p["whh"]) + p["bhh"][0]
        i = jax.nn.sigmoid(gates[:, 0 * H:1 * H])
        f = jax.nn.sigmoid(gates[:, 1 * H:2 * H])
        g = jnp.tanh(gates[:, 2 * H:3 * H])
        o = jax.nn.sigmoid(gates[:, 3 * H:4 * H])
        c = f * c + i * g
        h = o * jnp.tanh(c)
        hs.append(h)
    lstm_out = jnp.stack(hs, axis=1)                              # (B, T, H)
    mu = jnp.mean(lstm_out, axis=(0, 2), keepdims=True)           # training-mode BN
    var = jnp.mean((lstm_out - mu) ** 2, axis=(0, 2), keepdims=True)
    y = (lstm_out - mu) / jnp.sqrt(var + BN_EPS)
    y = y * p["gamma"][None, :, None] + p["beta"][None, :, None]
    out = mm(y.reshape(B * T, H), p["w3"]).reshape(B, T, -1) + p["b3"][0]
    return out


if __name__ == "__main__":
    # Module hyper-params (small, consistent with the forward pass):
    #   latent_dim=32, hidden_dim=32, output_shape=(seq_len=8, out_features=16)
    batch, seq_len, latent_dim, hidden_dim, out_features = 4, 8, 32, 32, 16

    key = jax.random.PRNGKey(0)
    k_z, k_p = jax.random.split(key)
    z = jax.random.normal(k_z, (batch, seq_len, latent_dim), jnp.float32)
    params = init_params(k_p, latent_dim, hidden_dim, out_features, seq_len)

    prep = prepare_params(params)            # one-time folding, outside the fwd path

    out = jax.block_until_ready(
        timeseries_decoder_forward(z, prep, out_features=out_features))

    # Reference with matching MXU precision (bf16 operands, f32 accumulation);
    # tolerance covers accumulation-order / bf16-ulp-level divergence only.
    ref = jax.block_until_ready(
        reference_forward(z, params, mxu_dtype=jnp.bfloat16))

    assert out.shape == (batch, seq_len, out_features)
    max_err = float(jnp.max(jnp.abs(out - ref)))
    assert max_err < 1e-2, f"mismatch vs reference: {max_err}"

    print("KERNEL_OK")
</pallas_src>

<mosaic_0001>
module attributes {stable_mosaic.version = 11 : i64} {
  func.func @decoder_kernel(%arg0: memref<64x32xbf16, #tpu.memory_space<vmem>>, %arg1: memref<32x32xbf16, #tpu.memory_space<vmem>>, %arg2: memref<1x32xf32, #tpu.memory_space<vmem>>, %arg3: memref<32x128xbf16, #tpu.memory_space<vmem>>, %arg4: memref<32x128xbf16, #tpu.memory_space<vmem>>, %arg5: memref<1x128xf32, #tpu.memory_space<vmem>>, %arg6: memref<8xf32, #tpu.memory_space<smem>>, %arg7: memref<8xf32, #tpu.memory_space<smem>>, %arg8: memref<32x128xbf16, #tpu.memory_space<vmem>>, %arg9: memref<1x128xf32, #tpu.memory_space<vmem>>, %arg10: memref<64x128xf32, #tpu.memory_space<vmem>>) attributes {dimension_semantics = [], scalar_prefetch = 0 : i64, scratch_operands = 0 : i64, tpu.core_type = #tpu.core_type<tc>} {
    %c0 = arith.constant 0 : index
    %c0_0 = arith.constant 0 : index
    %0 = vector.load %arg0[%c0, %c0_0] : memref<64x32xbf16, #tpu.memory_space<vmem>>, vector<64x32xbf16>
    %c0_1 = arith.constant 0 : index
    %c0_2 = arith.constant 0 : index
    %1 = vector.load %arg1[%c0_1, %c0_2] : memref<32x32xbf16, #tpu.memory_space<vmem>>, vector<32x32xbf16>
    %cst = arith.constant dense<0.000000e+00> : vector<64x32xf32>
    %2 = tpu.matmul %0, %1, %cst {dimension_numbers = #tpu.dot_dimension_numbers<[1], [0], [0], [1], [0, 0, 1, 1], [], []>} : vector<64x32xbf16>, vector<32x32xbf16>, vector<64x32xf32> -> vector<64x32xf32>
    %c0_3 = arith.constant 0 : index
    %c0_4 = arith.constant 0 : index
    %3 = vector.load %arg2[%c0_3, %c0_4] : memref<1x32xf32, #tpu.memory_space<vmem>>, vector<1x32xf32>
    %4 = vector.broadcast %3 : vector<1x32xf32> to vector<64x32xf32>
    %5 = arith.addf %2, %4 : vector<64x32xf32>
    %cst_5 = arith.constant 0.000000e+00 : f32
    %6 = vector.broadcast %cst_5 : f32 to vector<64x32xf32>
    %7 = arith.maximumf %5, %6 : vector<64x32xf32>
    %8 = arith.truncf %7 : vector<64x32xf32> to vector<64x32xbf16>
    %c0_6 = arith.constant 0 : index
    %c0_7 = arith.constant 0 : index
    %9 = vector.load %arg3[%c0_6, %c0_7] : memref<32x128xbf16, #tpu.memory_space<vmem>>, vector<32x128xbf16>
    %cst_8 = arith.constant dense<0.000000e+00> : vector<64x128xf32>
    %10 = tpu.matmul %8, %9, %cst_8 {dimension_numbers = #tpu.dot_dimension_numbers<[1], [0], [0], [1], [0, 0, 1, 1], [], []>} : vector<64x32xbf16>, vector<32x128xbf16>, vector<64x128xf32> -> vector<64x128xf32>
    %c0_9 = arith.constant 0 : index
    %c0_10 = arith.constant 0 : index
    %11 = vector.load %arg5[%c0_9, %c0_10] : memref<1x128xf32, #tpu.memory_space<vmem>>, vector<1x128xf32>
    %12 = vector.broadcast %11 : vector<1x128xf32> to vector<64x128xf32>
    %13 = arith.addf %10, %12 : vector<64x128xf32>
    %c0_11 = arith.constant 0 : index
    %c0_12 = arith.constant 0 : index
    %14 = vector.load %arg4[%c0_11, %c0_12] : memref<32x128xbf16, #tpu.memory_space<vmem>>, vector<32x128xbf16>
    %c0_13 = arith.constant 0 : index
    %c0_14 = arith.constant 0 : index
    %15 = vector.load %arg8[%c0_13, %c0_14] : memref<32x128xbf16, #tpu.memory_space<vmem>>, vector<32x128xbf16>
    %c0_15 = arith.constant 0 : index
    %c0_16 = arith.constant 0 : index
    %16 = vector.load %arg9[%c0_15, %c0_16] : memref<1x128xf32, #tpu.memory_space<vmem>>, vector<1x128xf32>
    %17 = tpu.iota {dimensions = array<i32: 1>} : vector<8x128xi32>
    %c64_i32 = arith.constant 64 : i32
    %18 = vector.broadcast %c64_i32 : i32 to vector<8x128xi32>
    %19 = arith.cmpi sge, %17, %18 : vector<8x128xi32>
    %c96_i32 = arith.constant 96 : i32
    %20 = vector.broadcast %c96_i32 : i32 to vector<8x128xi32>
    %21 = arith.cmpi slt, %17, %20 : vector<8x128xi32>
    %22 = arith.andi %19, %21 : vector<8x128xi1>
    %cst_17 = arith.constant 1.000000e+00 : f32
    %cst_18 = arith.constant 5.000000e-01 : f32
    %23 = vector.broadcast %cst_17 : f32 to vector<8x128xf32>
    %24 = vector.broadcast %cst_18 : f32 to vector<8x128xf32>
    %25 = arith.select %22, %23, %24 : vector<8x128xi1>, vector<8x128xf32>
    %26 = tpu.iota {dimensions = array<i32: 0>} : vector<8x32xi32>
    %c4_i32 = arith.constant 4 : i32
    %27 = vector.broadcast %c4_i32 : i32 to vector<8x32xi32>
    %28 = arith.cmpi slt, %26, %27 : vector<8x32xi32>
    %cst_19 = arith.constant 0.000000e+00 : f32
    %29 = vector.broadcast %cst_19 : f32 to vector<8x32xf32>
    %cst_20 = arith.constant 0.000000e+00 : f32
    %30 = vector.broadcast %cst_20 : f32 to vector<8x32xf32>
    %31 = vector.extract_strided_slice %13 {offsets = [0, 0], sizes = [8, 128], strides = [1, 1]} : vector<64x128xf32> to vector<8x128xf32>
    %32 = arith.truncf %29 : vector<8x32xf32> to vector<8x32xbf16>
    %cst_21 = arith.constant dense<0.000000e+00> : vector<8x128xf32>
    %33 = tpu.matmul %32, %14, %cst_21 {dimension_numbers = #tpu.dot_dimension_numbers<[1], [0], [0], [1], [0, 0, 1, 1], [], []>} : vector<8x32xbf16>, vector<32x128xbf16>, vector<8x128xf32> -> vector<8x128xf32>
    %34 = arith.addf %31, %33 : vector<8x128xf32>
    %35 = arith.mulf %34, %25 : vector<8x128xf32>
    %36 = math.tanh %35 : vector<8x128xf32>
    %cst_22 = arith.constant 5.000000e-01 : f32
    %37 = vector.broadcast %cst_22 : f32 to vector<8x128xf32>
    %38 = arith.mulf %37, %36 : vector<8x128xf32>
    %cst_23 = arith.constant 5.000000e-01 : f32
    %39 = vector.broadcast %cst_23 : f32 to vector<8x128xf32>
    %40 = arith.addf %38, %39 : vector<8x128xf32>
    %41 = arith.select %22, %36, %40 : vector<8x128xi1>, vector<8x128xf32>
    %42 = vector.extract_strided_slice %41 {offsets = [0, 0], sizes = [8, 32], strides = [1, 1]} : vector<8x128xf32> to vector<8x32xf32>
    %43 = vector.extract_strided_slice %41 {offsets = [0, 32], sizes = [8, 32], strides = [1, 1]} : vector<8x128xf32> to vector<8x32xf32>
    %44 = vector.extract_strided_slice %41 {offsets = [0, 64], sizes = [8, 32], strides = [1, 1]} : vector<8x128xf32> to vector<8x32xf32>
    %45 = vector.extract_strided_slice %41 {offsets = [0, 96], sizes = [8, 32], strides = [1, 1]} : vector<8x128xf32> to vector<8x32xf32>
    %46 = arith.mulf %43, %30 : vector<8x32xf32>
    %47 = arith.mulf %42, %44 : vector<8x32xf32>
    %48 = arith.addf %46, %47 : vector<8x32xf32>
    %49 = math.tanh %48 : vector<8x32xf32>
    %50 = arith.mulf %45, %49 : vector<8x32xf32>
    %cst_24 = arith.constant 0.000000e+00 : f32
    %51 = vector.broadcast %cst_24 : f32 to vector<8x32xf32>
    %52 = arith.select %28, %50, %51 : vector<8x32xi1>, vector<8x32xf32>
    %cst_25 = arith.constant dense<0.000000e+00> : vector<8xf32>
    %53 = vector.multi_reduction <add>, %52, %cst_25 [1] : vector<8x32xf32> to vector<8xf32>
    %54 = vector.shape_cast %53 : vector<8xf32> to vector<8x1xf32>
    %cst_26 = arith.constant dense<0.000000e+00> : vector<1xf32>
    %55 = vector.multi_reduction <add>, %54, %cst_26 [0] : vector<8x1xf32> to vector<1xf32>
    %56 = vector.shape_cast %55 : vector<1xf32> to vector<1x1xf32>
    %57 = arith.mulf %52, %52 : vector<8x32xf32>
    %cst_27 = arith.constant dense<0.000000e+00> : vector<8xf32>
    %58 = vector.multi_reduction <add>, %57, %cst_27 [1] : vector<8x32xf32> to vector<8xf32>
    %59 = vector.shape_cast %58 : vector<8xf32> to vector<8x1xf32>
    %cst_28 = arith.constant dense<0.000000e+00> : vector<1xf32>
    %60 = vector.multi_reduction <add>, %59, %cst_28 [0] : vector<8x1xf32> to vector<1xf32>
    %61 = vector.shape_cast %60 : vector<1xf32> to vector<1x1xf32>
    %cst_29 = arith.constant 7.812500e-03 : f32
    %62 = vector.broadcast %cst_29 : f32 to vector<1x1xf32>
    %63 = arith.mulf %56, %62 : vector<1x1xf32>
    %cst_30 = arith.constant 7.812500e-03 : f32
    %64 = vector.broadcast %cst_30 : f32 to vector<1x1xf32>
    %65 = arith.mulf %61, %64 : vector<1x1xf32>
    %66 = arith.mulf %63, %63 : vector<1x1xf32>
    %67 = arith.subf %65, %66 : vector<1x1xf32>
    %cst_31 = arith.constant 9.99999974E-6 : f32
    %68 = vector.broadcast %cst_31 : f32 to vector<1x1xf32>
    %69 = arith.addf %67, %68 : vector<1x1xf32>
    %70 = math.rsqrt %69 : vector<1x1xf32>
    %c0_32 = arith.constant 0 : index
    %71 = memref.load %arg6[%c0_32] : memref<8xf32, #tpu.memory_space<smem>>
    %72 = vector.broadcast %71 : f32 to vector<1x1xf32>
    %73 = arith.mulf %70, %72 : vector<1x1xf32>
    %74 = vector.broadcast %63 : vector<1x1xf32> to vector<8x32xf32>
    %75 = arith.subf %50, %74 : vector<8x32xf32>
    %76 = vector.broadcast %73 : vector<1x1xf32> to vector<8x32xf32>
    %77 = arith.mulf %75, %76 : vector<8x32xf32>
    %c0_33 = arith.constant 0 : index
    %78 = memref.load %arg7[%c0_33] : memref<8xf32, #tpu.memory_space<smem>>
    %79 = vector.broadcast %78 : f32 to vector<8x32xf32>
    %80 = arith.addf %77, %79 : vector<8x32xf32>
    %81 = arith.truncf %80 : vector<8x32xf32> to vector<8x32xbf16>
    %cst_34 = arith.constant dense<0.000000e+00> : vector<8x128xf32>
    %82 = tpu.matmul %81, %15, %cst_34 {dimension_numbers = #tpu.dot_dimension_numbers<[1], [0], [0], [1], [0, 0, 1, 1], [], []>} : vector<8x32xbf16>, vector<32x128xbf16>, vector<8x128xf32> -> vector<8x128xf32>
    %83 = vector.broadcast %16 : vector<1x128xf32> to vector<8x128xf32>
    %84 = arith.addf %82, %83 : vector<8x128xf32>
    %c0_35 = arith.constant 0 : index
    %c0_36 = arith.constant 0 : index
    %85 = vector.load %arg10[%c0_35, %c0_36] : memref<64x128xf32, #tpu.memory_space<vmem>>, vector<8x128xf32>
    tpu.vector_store %arg10[%c0_35, %c0_36], %84 {strides = array<i32>} : memref<64x128xf32, #tpu.memory_space<vmem>>, vector<8x128xf32>,
    %86 = vector.extract_strided_slice %13 {offsets = [8, 0], sizes = [8, 128], strides = [1, 1]} : vector<64x128xf32> to vector<8x128xf32>
    %87 = arith.truncf %50 : vector<8x32xf32> to vector<8x32xbf16>
    %cst_37 = arith.constant dense<0.000000e+00> : vector<8x128xf32>
    %88 = tpu.matmul %87, %14, %cst_37 {dimension_numbers = #tpu.dot_dimension_numbers<[1], [0], [0], [1], [0, 0, 1, 1], [], []>} : vector<8x32xbf16>, vector<32x128xbf16>, vector<8x128xf32> -> vector<8x128xf32>
    %89 = arith.addf %86, %88 : vector<8x128xf32>
    %90 = arith.mulf %89, %25 : vector<8x128xf32>
    %91 = math.tanh %90 : vector<8x128xf32>
    %cst_38 = arith.constant 5.000000e-01 : f32
    %92 = vector.broadcast %cst_38 : f32 to vector<8x128xf32>
    %93 = arith.mulf %92, %91 : vector<8x128xf32>
    %cst_39 = arith.constant 5.000000e-01 : f32
    %94 = vector.broadcast %cst_39 : f32 to vector<8x128xf32>
    %95 = arith.addf %93, %94 : vector<8x128xf32>
    %96 = arith.select %22, %91, %95 : vector<8x128xi1>, vector<8x128xf32>
    %97 = vector.extract_strided_slice %96 {offsets = [0, 0], sizes = [8, 32], strides = [1, 1]} : vector<8x128xf32> to vector<8x32xf32>
    %98 = vector.extract_strided_slice %96 {offsets = [0, 32], sizes = [8, 32], strides = [1, 1]} : vector<8x128xf32> to vector<8x32xf32>
    %99 = vector.extract_strided_slice %96 {offsets = [0, 64], sizes = [8, 32], strides = [1, 1]} : vector<8x128xf32> to vector<8x32xf32>
    %100 = vector.extract_strided_slice %96 {offsets = [0, 96], sizes = [8, 32], strides = [1, 1]} : vector<8x128xf32> to vector<8x32xf32>
    %101 = arith.mulf %98, %48 : vector<8x32xf32>
    %102 = arith.mulf %97, %99 : vector<8x32xf32>
    %103 = arith.addf %101, %102 : vector<8x32xf32>
    %104 = math.tanh %103 : vector<8x32xf32>
    %105 = arith.mulf %100, %104 : vector<8x32xf32>
    %cst_40 = arith.constant 0.000000e+00 : f32
    %106 = vector.broadcast %cst_40 : f32 to vector<8x32xf32>
    %107 = arith.select %28, %105, %106 : vector<8x32xi1>, vector<8x32xf32>
    %cst_41 = arith.constant dense<0.000000e+00> : vector<8xf32>
    %108 = vector.multi_reduction <add>, %107, %cst_41 [1] : vector<8x32xf32> to vector<8xf32>
    %109 = vector.shape_cast %108 : vector<8xf32> to vector<8x1xf32>
    %cst_42 = arith.constant dense<0.000000e+00> : vector<1xf32>
    %110 = vector.multi_reduction <add>, %109, %cst_42 [0] : vector<8x1xf32> to vector<1xf32>
    %111 = vector.shape_cast %110 : vector<1xf32> to vector<1x1xf32>
    %112 = arith.mulf %107, %107 : vector<8x32xf32>
    %cst_43 = arith.constant dense<0.000000e+00> : vector<8xf32>
    %113 = vector.multi_reduction <add>, %112, %cst_43 [1] : vector<8x32xf32> to vector<8xf32>
    %114 = vector.shape_cast %113 : vector<8xf32> to vector<8x1xf32>
    %cst_44 = arith.constant dense<0.000000e+00> : vector<1xf32>
    %115 = vector.multi_reduction <add>, %114, %cst_44 [0] : vector<8x1xf32> to vector<1xf32>
    %116 = vector.shape_cast %115 : vector<1xf32> to vector<1x1xf32>
    %cst_45 = arith.constant 7.812500e-03 : f32
    %117 = vector.broadcast %cst_45 : f32 to vector<1x1xf32>
    %118 = arith.mulf %111, %117 : vector<1x1xf32>
    %cst_46 = arith.constant 7.812500e-03 : f32
    %119 = vector.broadcast %cst_46 : f32 to vector<1x1xf32>
    %120 = arith.mulf %116, %119 : vector<1x1xf32>
    %121 = arith.mulf %118, %118 : vector<1x1xf32>
    %122 = arith.subf %120, %121 : vector<1x1xf32>
    %cst_47 = arith.constant 9.99999974E-6 : f32
    %123 = vector.broadcast %cst_47 : f32 to vector<1x1xf32>
    %124 = arith.addf %122, %123 : vector<1x1xf32>
    %125 = math.rsqrt %124 : vector<1x1xf32>
    %c1 = arith.constant 1 : index
    %126 = memref.load %arg6[%c1] : memref<8xf32, #tpu.memory_space<smem>>
    %127 = vector.broadcast %126 : f32 to vector<1x1xf32>
    %128 = arith.mulf %125, %127 : vector<1x1xf32>
    %129 = vector.broadcast %118 : vector<1x1xf32> to vector<8x32xf32>
    %130 = arith.subf %105, %129 : vector<8x32xf32>
    %131 = vector.broadcast %128 : vector<1x1xf32> to vector<8x32xf32>
    %132 = arith.mulf %130, %131 : vector<8x32xf32>
    %c1_48 = arith.constant 1 : index
    %133 = memref.load %arg7[%c1_48] : memref<8xf32, #tpu.memory_space<smem>>
    %134 = vector.broadcast %133 : f32 to vector<8x32xf32>
    %135 = arith.addf %132, %134 : vector<8x32xf32>
    %136 = arith.truncf %135 : vector<8x32xf32> to vector<8x32xbf16>
    %cst_49 = arith.constant dense<0.000000e+00> : vector<8x128xf32>
    %137 = tpu.matmul %136, %15, %cst_49 {dimension_numbers = #tpu.dot_dimension_numbers<[1], [0], [0], [1], [0, 0, 1, 1], [], []>} : vector<8x32xbf16>, vector<32x128xbf16>, vector<8x128xf32> -> vector<8x128xf32>
    %138 = vector.broadcast %16 : vector<1x128xf32> to vector<8x128xf32>
    %139 = arith.addf %137, %138 : vector<8x128xf32>
    %c8 = arith.constant 8 : index
    %c0_50 = arith.constant 0 : index
    %140 = vector.load %arg10[%c8, %c0_50] : memref<64x128xf32, #tpu.memory_space<vmem>>, vector<8x128xf32>
    tpu.vector_store %arg10[%c8, %c0_50], %139 {strides = array<i32>} : memref<64x128xf32, #tpu.memory_space<vmem>>, vector<8x128xf32>,
    %141 = vector.extract_strided_slice %13 {offsets = [16, 0], sizes = [8, 128], strides = [1, 1]} : vector<64x128xf32> to vector<8x128xf32>
    %142 = arith.truncf %105 : vector<8x32xf32> to vector<8x32xbf16>
    %cst_51 = arith.constant dense<0.000000e+00> : vector<8x128xf32>
    %143 = tpu.matmul %142, %14, %cst_51 {dimension_numbers = #tpu.dot_dimension_numbers<[1], [0], [0], [1], [0, 0, 1, 1], [], []>} : vector<8x32xbf16>, vector<32x128xbf16>, vector<8x128xf32> -> vector<8x128xf32>
    %144 = arith.addf %141, %143 : vector<8x128xf32>
    %145 = arith.mulf %144, %25 : vector<8x128xf32>
    %146 = math.tanh %145 : vector<8x128xf32>
    %cst_52 = arith.constant 5.000000e-01 : f32
    %147 = vector.broadcast %cst_52 : f32 to vector<8x128xf32>
    %148 = arith.mulf %147, %146 : vector<8x128xf32>
    %cst_53 = arith.constant 5.000000e-01 : f32
    %149 = vector.broadcast %cst_53 : f32 to vector<8x128xf32>
    %150 = arith.addf %148, %149 : vector<8x128xf32>
    %151 = arith.select %22, %146, %150 : vector<8x128xi1>, vector<8x128xf32>
    %152 = vector.extract_strided_slice %151 {offsets = [0, 0], sizes = [8, 32], strides = [1, 1]} : vector<8x128xf32> to vector<8x32xf32>
    %153 = vector.extract_strided_slice %151 {offsets = [0, 32], sizes = [8, 32], strides = [1, 1]} : vector<8x128xf32> to vector<8x32xf32>
    %154 = vector.extract_strided_slice %151 {offsets = [0, 64], sizes = [8, 32], strides = [1, 1]} : vector<8x128xf32> to vector<8x32xf32>
    %155 = vector.extract_strided_slice %151 {offsets = [0, 96], sizes = [8, 32], strides = [1, 1]} : vector<8x128xf32> to vector<8x32xf32>
    %156 = arith.mulf %153, %103 : vector<8x32xf32>
    %157 = arith.mulf %152, %154 : vector<8x32xf32>
    %158 = arith.addf %156, %157 : vector<8x32xf32>
    %159 = math.tanh %158 : vector<8x32xf32>
    %160 = arith.mulf %155, %159 : vector<8x32xf32>
    %cst_54 = arith.constant 0.000000e+00 : f32
    %161 = vector.broadcast %cst_54 : f32 to vector<8x32xf32>
    %162 = arith.select %28, %160, %161 : vector<8x32xi1>, vector<8x32xf32>
    %cst_55 = arith.constant dense<0.000000e+00> : vector<8xf32>
    %163 = vector.multi_reduction <add>, %162, %cst_55 [1] : vector<8x32xf32> to vector<8xf32>
    %164 = vector.shape_cast %163 : vector<8xf32> to vector<8x1xf32>
    %cst_56 = arith.constant dense<0.000000e+00> : vector<1xf32>
    %165 = vector.multi_reduction <add>, %164, %cst_56 [0] : vector<8x1xf32> to vector<1xf32>
    %166 = vector.shape_cast %165 : vector<1xf32> to vector<1x1xf32>
    %167 = arith.mulf %162, %162 : vector<8x32xf32>
    %cst_57 = arith.constant dense<0.000000e+00> : vector<8xf32>
    %168 = vector.multi_reduction <add>, %167, %cst_57 [1] : vector<8x32xf32> to vector<8xf32>
    %169 = vector.shape_cast %168 : vector<8xf32> to vector<8x1xf32>
    %cst_58 = arith.constant dense<0.000000e+00> : vector<1xf32>
    %170 = vector.multi_reduction <add>, %169, %cst_58 [0] : vector<8x1xf32> to vector<1xf32>
    %171 = vector.shape_cast %170 : vector<1xf32> to vector<1x1xf32>
    %cst_59 = arith.constant 7.812500e-03 : f32
    %172 = vector.broadcast %cst_59 : f32 to vector<1x1xf32>
    %173 = arith.mulf %166, %172 : vector<1x1xf32>
    %cst_60 = arith.constant 7.812500e-03 : f32
    %174 = vector.broadcast %cst_60 : f32 to vector<1x1xf32>
    %175 = arith.mulf %171, %174 : vector<1x1xf32>
    %176 = arith.mulf %173, %173 : vector<1x1xf32>
    %177 = arith.subf %175, %176 : vector<1x1xf32>
    %cst_61 = arith.constant 9.99999974E-6 : f32
    %178 = vector.broadcast %cst_61 : f32 to vector<1x1xf32>
    %179 = arith.addf %177, %178 : vector<1x1xf32>
    %180 = math.rsqrt %179 : vector<1x1xf32>
    %c2 = arith.constant 2 : index
    %181 = memref.load %arg6[%c2] : memref<8xf32, #tpu.memory_space<smem>>
    %182 = vector.broadcast %181 : f32 to vector<1x1xf32>
    %183 = arith.mulf %180, %182 : vector<1x1xf32>
    %184 = vector.broadcast %173 : vector<1x1xf32> to vector<8x32xf32>
    %185 = arith.subf %160, %184 : vector<8x32xf32>
    %186 = vector.broadcast %183 : vector<1x1xf32> to vector<8x32xf32>
    %187 = arith.mulf %185, %186 : vector<8x32xf32>
    %c2_62 = arith.constant 2 : index
    %188 = memref.load %arg7[%c2_62] : memref<8xf32, #tpu.memory_space<smem>>
    %189 = vector.broadcast %188 : f32 to vector<8x32xf32>
    %190 = arith.addf %187, %189 : vector<8x32xf32>
    %191 = arith.truncf %190 : vector<8x32xf32> to vector<8x32xbf16>
    %cst_63 = arith.constant dense<0.000000e+00> : vector<8x128xf32>
    %192 = tpu.matmul %191, %15, %cst_63 {dimension_numbers = #tpu.dot_dimension_numbers<[1], [0], [0], [1], [0, 0, 1, 1], [], []>} : vector<8x32xbf16>, vector<32x128xbf16>, vector<8x128xf32> -> vector<8x128xf32>
    %193 = vector.broadcast %16 : vector<1x128xf32> to vector<8x128xf32>
    %194 = arith.addf %192, %193 : vector<8x128xf32>
    %c16 = arith.constant 16 : index
    %c0_64 = arith.constant 0 : index
    %195 = vector.load %arg10[%c16, %c0_64] : memref<64x128xf32, #tpu.memory_space<vmem>>, vector<8x128xf32>
    tpu.vector_store %arg10[%c16, %c0_64], %194 {strides = array<i32>} : memref<64x128xf32, #tpu.memory_space<vmem>>, vector<8x128xf32>,
    %196 = vector.extract_strided_slice %13 {offsets = [24, 0], sizes = [8, 128], strides = [1, 1]} : vector<64x128xf32> to vector<8x128xf32>
    %197 = arith.truncf %160 : vector<8x32xf32> to vector<8x32xbf16>
    %cst_65 = arith.constant dense<0.000000e+00> : vector<8x128xf32>
    %198 = tpu.matmul %197, %14, %cst_65 {dimension_numbers = #tpu.dot_dimension_numbers<[1], [0], [0], [1], [0, 0, 1, 1], [], []>} : vector<8x32xbf16>, vector<32x128xbf16>, vector<8x128xf32> -> vector<8x128xf32>
    %199 = arith.addf %196, %198 : vector<8x128xf32>
    %200 = arith.mulf %199, %25 : vector<8x128xf32>
    %201 = math.tanh %200 : vector<8x128xf32>
    %cst_66 = arith.constant 5.000000e-01 : f32
    %202 = vector.broadcast %cst_66 : f32 to vector<8x128xf32>
    %203 = arith.mulf %202, %201 : vector<8x128xf32>
    %cst_67 = arith.constant 5.000000e-01 : f32
    %204 = vector.broadcast %cst_67 : f32 to vector<8x128xf32>
    %205 = arith.addf %203, %204 : vector<8x128xf32>
    %206 = arith.select %22, %201, %205 : vector<8x128xi1>, vector<8x128xf32>
    %207 = vector.extract_strided_slice %206 {offsets = [0, 0], sizes = [8, 32], strides = [1, 1]} : vector<8x128xf32> to vector<8x32xf32>
    %208 = vector.extract_strided_slice %206 {offsets = [0, 32], sizes = [8, 32], strides = [1, 1]} : vector<8x128xf32> to vector<8x32xf32>
    %209 = vector.extract_strided_slice %206 {offsets = [0, 64], sizes = [8, 32], strides = [1, 1]} : vector<8x128xf32> to vector<8x32xf32>
    %210 = vector.extract_strided_slice %206 {offsets = [0, 96], sizes = [8, 32], strides = [1, 1]} : vector<8x128xf32> to vector<8x32xf32>
    %211 = arith.mulf %208, %158 : vector<8x32xf32>
    %212 = arith.mulf %207, %209 : vector<8x32xf32>
    %213 = arith.addf %211, %212 : vector<8x32xf32>
    %214 = math.tanh %213 : vector<8x32xf32>
    %215 = arith.mulf %210, %214 : vector<8x32xf32>
    %cst_68 = arith.constant 0.000000e+00 : f32
    %216 = vector.broadcast %cst_68 : f32 to vector<8x32xf32>
    %217 = arith.select %28, %215, %216 : vector<8x32xi1>, vector<8x32xf32>
    %cst_69 = arith.constant dense<0.000000e+00> : vector<8xf32>
    %218 = vector.multi_reduction <add>, %217, %cst_69 [1] : vector<8x32xf32> to vector<8xf32>
    %219 = vector.shape_cast %218 : vector<8xf32> to vector<8x1xf32>
    %cst_70 = arith.constant dense<0.000000e+00> : vector<1xf32>
    %220 = vector.multi_reduction <add>, %219, %cst_70 [0] : vector<8x1xf32> to vector<1xf32>
    %221 = vector.shape_cast %220 : vector<1xf32> to vector<1x1xf32>
    %222 = arith.mulf %217, %217 : vector<8x32xf32>
    %cst_71 = arith.constant dense<0.000000e+00> : vector<8xf32>
    %223 = vector.multi_reduction <add>, %222, %cst_71 [1] : vector<8x32xf32> to vector<8xf32>
    %224 = vector.shape_cast %223 : vector<8xf32> to vector<8x1xf32>
    %cst_72 = arith.constant dense<0.000000e+00> : vector<1xf32>
    %225 = vector.multi_reduction <add>, %224, %cst_72 [0] : vector<8x1xf32> to vector<1xf32>
    %226 = vector.shape_cast %225 : vector<1xf32> to vector<1x1xf32>
    %cst_73 = arith.constant 7.812500e-03 : f32
    %227 = vector.broadcast %cst_73 : f32 to vector<1x1xf32>
    %228 = arith.mulf %221, %227 : vector<1x1xf32>
    %cst_74 = arith.constant 7.812500e-03 : f32
    %229 = vector.broadcast %cst_74 : f32 to vector<1x1xf32>
    %230 = arith.mulf %226, %229 : vector<1x1xf32>
    %231 = arith.mulf %228, %228 : vector<1x1xf32>
    %232 = arith.subf %230, %231 : vector<1x1xf32>
    %cst_75 = arith.constant 9.99999974E-6 : f32
    %233 = vector.broadcast %cst_75 : f32 to vector<1x1xf32>
    %234 = arith.addf %232, %233 : vector<1x1xf32>
    %235 = math.rsqrt %234 : vector<1x1xf32>
    %c3 = arith.constant 3 : index
    %236 = memref.load %arg6[%c3] : memref<8xf32, #tpu.memory_space<smem>>
    %237 = vector.broadcast %236 : f32 to vector<1x1xf32>
    %238 = arith.mulf %235, %237 : vector<1x1xf32>
    %239 = vector.broadcast %228 : vector<1x1xf32> to vector<8x32xf32>
    %240 = arith.subf %215, %239 : vector<8x32xf32>
    %241 = vector.broadcast %238 : vector<1x1xf32> to vector<8x32xf32>
    %242 = arith.mulf %240, %241 : vector<8x32xf32>
    %c3_76 = arith.constant 3 : index
    %243 = memref.load %arg7[%c3_76] : memref<8xf32, #tpu.memory_space<smem>>
    %244 = vector.broadcast %243 : f32 to vector<8x32xf32>
    %245 = arith.addf %242, %244 : vector<8x32xf32>
    %246 = arith.truncf %245 : vector<8x32xf32> to vector<8x32xbf16>
    %cst_77 = arith.constant dense<0.000000e+00> : vector<8x128xf32>
    %247 = tpu.matmul %246, %15, %cst_77 {dimension_numbers = #tpu.dot_dimension_numbers<[1], [0], [0], [1], [0, 0, 1, 1], [], []>} : vector<8x32xbf16>, vector<32x128xbf16>, vector<8x128xf32> -> vector<8x128xf32>
    %248 = vector.broadcast %16 : vector<1x128xf32> to vector<8x128xf32>
    %249 = arith.addf %247, %248 : vector<8x128xf32>
    %c24 = arith.constant 24 : index
    %c0_78 = arith.constant 0 : index
    %250 = vector.load %arg10[%c24, %c0_78] : memref<64x128xf32, #tpu.memory_space<vmem>>, vector<8x128xf32>
    tpu.vector_store %arg10[%c24, %c0_78], %249 {strides = array<i32>} : memref<64x128xf32, #tpu.memory_space<vmem>>, vector<8x128xf32>,
    %251 = vector.extract_strided_slice %13 {offsets = [32, 0], sizes = [8, 128], strides = [1, 1]} : vector<64x128xf32> to vector<8x128xf32>
    %252 = arith.truncf %215 : vector<8x32xf32> to vector<8x32xbf16>
    %cst_79 = arith.constant dense<0.000000e+00> : vector<8x128xf32>
    %253 = tpu.matmul %252, %14, %cst_79 {dimension_numbers = #tpu.dot_dimension_numbers<[1], [0], [0], [1], [0, 0, 1, 1], [], []>} : vector<8x32xbf16>, vector<32x128xbf16>, vector<8x128xf32> -> vector<8x128xf32>
    %254 = arith.addf %251, %253 : vector<8x128xf32>
    %255 = arith.mulf %254, %25 : vector<8x128xf32>
    %256 = math.tanh %255 : vector<8x128xf32>
    %cst_80 = arith.constant 5.000000e-01 : f32
    %257 = vector.broadcast %cst_80 : f32 to vector<8x128xf32>
    %258 = arith.mulf %257, %256 : vector<8x128xf32>
    %cst_81 = arith.constant 5.000000e-01 : f32
    %259 = vector.broadcast %cst_81 : f32 to vector<8x128xf32>
    %260 = arith.addf %258, %259 : vector<8x128xf32>
    %261 = arith.select %22, %256, %260 : vector<8x128xi1>, vector<8x128xf32>
    %262 = vector.extract_strided_slice %261 {offsets = [0, 0], sizes = [8, 32], strides = [1, 1]} : vector<8x128xf32> to vector<8x32xf32>
    %263 = vector.extract_strided_slice %261 {offsets = [0, 32], sizes = [8, 32], strides = [1, 1]} : vector<8x128xf32> to vector<8x32xf32>
    %264 = vector.extract_strided_slice %261 {offsets = [0, 64], sizes = [8, 32], strides = [1, 1]} : vector<8x128xf32> to vector<8x32xf32>
    %265 = vector.extract_strided_slice %261 {offsets = [0, 96], sizes = [8, 32], strides = [1, 1]} : vector<8x128xf32> to vector<8x32xf32>
    %266 = arith.mulf %263, %213 : vector<8x32xf32>
    %267 = arith.mulf %262, %264 : vector<8x32xf32>
    %268 = arith.addf %266, %267 : vector<8x32xf32>
    %269 = math.tanh %268 : vector<8x32xf32>
    %270 = arith.mulf %265, %269 : vector<8x32xf32>
    %cst_82 = arith.constant 0.000000e+00 : f32
    %271 = vector.broadcast %cst_82 : f32 to vector<8x32xf32>
    %272 = arith.select %28, %270, %271 : vector<8x32xi1>, vector<8x32xf32>
    %cst_83 = arith.constant dense<0.000000e+00> : vector<8xf32>
    %273 = vector.multi_reduction <add>, %272, %cst_83 [1] : vector<8x32xf32> to vector<8xf32>
    %274 = vector.shape_cast %273 : vector<8xf32> to vector<8x1xf32>
    %cst_84 = arith.constant dense<0.000000e+00> : vector<1xf32>
    %275 = vector.multi_reduction <add>, %274, %cst_84 [0] : vector<8x1xf32> to vector<1xf32>
    %276 = vector.shape_cast %275 : vector<1xf32> to vector<1x1xf32>
    %277 = arith.mulf %272, %272 : vector<8x32xf32>
    %cst_85 = arith.constant dense<0.000000e+00> : vector<8xf32>
    %278 = vector.multi_reduction <add>, %277, %cst_85 [1] : vector<8x32xf32> to vector<8xf32>
    %279 = vector.shape_cast %278 : vector<8xf32> to vector<8x1xf32>
    %cst_86 = arith.constant dense<0.000000e+00> : vector<1xf32>
    %280 = vector.multi_reduction <add>, %279, %cst_86 [0] : vector<8x1xf32> to vector<1xf32>
    %281 = vector.shape_cast %280 : vector<1xf32> to vector<1x1xf32>
    %cst_87 = arith.constant 7.812500e-03 : f32
    %282 = vector.broadcast %cst_87 : f32 to vector<1x1xf32>
    %283 = arith.mulf %276, %282 : vector<1x1xf32>
    %cst_88 = arith.constant 7.812500e-03 : f32
    %284 = vector.broadcast %cst_88 : f32 to vector<1x1xf32>
    %285 = arith.mulf %281, %284 : vector<1x1xf32>
    %286 = arith.mulf %283, %283 : vector<1x1xf32>
    %287 = arith.subf %285, %286 : vector<1x1xf32>
    %cst_89 = arith.constant 9.99999974E-6 : f32
    %288 = vector.broadcast %cst_89 : f32 to vector<1x1xf32>
    %289 = arith.addf %287, %288 : vector<1x1xf32>
    %290 = math.rsqrt %289 : vector<1x1xf32>
    %c4 = arith.constant 4 : index
    %291 = memref.load %arg6[%c4] : memref<8xf32, #tpu.memory_space<smem>>
    %292 = vector.broadcast %291 : f32 to vector<1x1xf32>
    %293 = arith.mulf %290, %292 : vector<1x1xf32>
    %294 = vector.broadcast %283 : vector<1x1xf32> to vector<8x32xf32>
    %295 = arith.subf %270, %294 : vector<8x32xf32>
    %296 = vector.broadcast %293 : vector<1x1xf32> to vector<8x32xf32>
    %297 = arith.mulf %295, %296 : vector<8x32xf32>
    %c4_90 = arith.constant 4 : index
    %298 = memref.load %arg7[%c4_90] : memref<8xf32, #tpu.memory_space<smem>>
    %299 = vector.broadcast %298 : f32 to vector<8x32xf32>
    %300 = arith.addf %297, %299 : vector<8x32xf32>
    %301 = arith.truncf %300 : vector<8x32xf32> to vector<8x32xbf16>
    %cst_91 = arith.constant dense<0.000000e+00> : vector<8x128xf32>
    %302 = tpu.matmul %301, %15, %cst_91 {dimension_numbers = #tpu.dot_dimension_numbers<[1], [0], [0], [1], [0, 0, 1, 1], [], []>} : vector<8x32xbf16>, vector<32x128xbf16>, vector<8x128xf32> -> vector<8x128xf32>
    %303 = vector.broadcast %16 : vector<1x128xf32> to vector<8x128xf32>
    %304 = arith.addf %302, %303 : vector<8x128xf32>
    %c32 = arith.constant 32 : index
    %c0_92 = arith.constant 0 : index
    %305 = vector.load %arg10[%c32, %c0_92] : memref<64x128xf32, #tpu.memory_space<vmem>>, vector<8x128xf32>
    tpu.vector_store %arg10[%c32, %c0_92], %304 {strides = array<i32>} : memref<64x128xf32, #tpu.memory_space<vmem>>, vector<8x128xf32>,
    %306 = vector.extract_strided_slice %13 {offsets = [40, 0], sizes = [8, 128], strides = [1, 1]} : vector<64x128xf32> to vector<8x128xf32>
    %307 = arith.truncf %270 : vector<8x32xf32> to vector<8x32xbf16>
    %cst_93 = arith.constant dense<0.000000e+00> : vector<8x128xf32>
    %308 = tpu.matmul %307, %14, %cst_93 {dimension_numbers = #tpu.dot_dimension_numbers<[1], [0], [0], [1], [0, 0, 1, 1], [], []>} : vector<8x32xbf16>, vector<32x128xbf16>, vector<8x128xf32> -> vector<8x128xf32>
    %309 = arith.addf %306, %308 : vector<8x128xf32>
    %310 = arith.mulf %309, %25 : vector<8x128xf32>
    %311 = math.tanh %310 : vector<8x128xf32>
    %cst_94 = arith.constant 5.000000e-01 : f32
    %312 = vector.broadcast %cst_94 : f32 to vector<8x128xf32>
    %313 = arith.mulf %312, %311 : vector<8x128xf32>
    %cst_95 = arith.constant 5.000000e-01 : f32
    %314 = vector.broadcast %cst_95 : f32 to vector<8x128xf32>
    %315 = arith.addf %313, %314 : vector<8x128xf32>
    %316 = arith.select %22, %311, %315 : vector<8x128xi1>, vector<8x128xf32>
    %317 = vector.extract_strided_slice %316 {offsets = [0, 0], sizes = [8, 32], strides = [1, 1]} : vector<8x128xf32> to vector<8x32xf32>
    %318 = vector.extract_strided_slice %316 {offsets = [0, 32], sizes = [8, 32], strides = [1, 1]} : vector<8x128xf32> to vector<8x32xf32>
    %319 = vector.extract_strided_slice %316 {offsets = [0, 64], sizes = [8, 32], strides = [1, 1]} : vector<8x128xf32> to vector<8x32xf32>
    %320 = vector.extract_strided_slice %316 {offsets = [0, 96], sizes = [8, 32], strides = [1, 1]} : vector<8x128xf32> to vector<8x32xf32>
    %321 = arith.mulf %318, %268 : vector<8x32xf32>
    %322 = arith.mulf %317, %319 : vector<8x32xf32>
    %323 = arith.addf %321, %322 : vector<8x32xf32>
    %324 = math.tanh %323 : vector<8x32xf32>
    %325 = arith.mulf %320, %324 : vector<8x32xf32>
    %cst_96 = arith.constant 0.000000e+00 : f32
    %326 = vector.broadcast %cst_96 : f32 to vector<8x32xf32>
    %327 = arith.select %28, %325, %326 : vector<8x32xi1>, vector<8x32xf32>
    %cst_97 = arith.constant dense<0.000000e+00> : vector<8xf32>
    %328 = vector.multi_reduction <add>, %327, %cst_97 [1] : vector<8x32xf32> to vector<8xf32>
    %329 = vector.shape_cast %328 : vector<8xf32> to vector<8x1xf32>
    %cst_98 = arith.constant dense<0.000000e+00> : vector<1xf32>
    %330 = vector.multi_reduction <add>, %329, %cst_98 [0] : vector<8x1xf32> to vector<1xf32>
    %331 = vector.shape_cast %330 : vector<1xf32> to vector<1x1xf32>
    %332 = arith.mulf %327, %327 : vector<8x32xf32>
    %cst_99 = arith.constant dense<0.000000e+00> : vector<8xf32>
    %333 = vector.multi_reduction <add>, %332, %cst_99 [1] : vector<8x32xf32> to vector<8xf32>
    %334 = vector.shape_cast %333 : vector<8xf32> to vector<8x1xf32>
    %cst_100 = arith.constant dense<0.000000e+00> : vector<1xf32>
    %335 = vector.multi_reduction <add>, %334, %cst_100 [0] : vector<8x1xf32> to vector<1xf32>
    %336 = vector.shape_cast %335 : vector<1xf32> to vector<1x1xf32>
    %cst_101 = arith.constant 7.812500e-03 : f32
    %337 = vector.broadcast %cst_101 : f32 to vector<1x1xf32>
    %338 = arith.mulf %331, %337 : vector<1x1xf32>
    %cst_102 = arith.constant 7.812500e-03 : f32
    %339 = vector.broadcast %cst_102 : f32 to vector<1x1xf32>
    %340 = arith.mulf %336, %339 : vector<1x1xf32>
    %341 = arith.mulf %338, %338 : vector<1x1xf32>
    %342 = arith.subf %340, %341 : vector<1x1xf32>
    %cst_103 = arith.constant 9.99999974E-6 : f32
    %343 = vector.broadcast %cst_103 : f32 to vector<1x1xf32>
    %344 = arith.addf %342, %343 : vector<1x1xf32>
    %345 = math.rsqrt %344 : vector<1x1xf32>
    %c5 = arith.constant 5 : index
    %346 = memref.load %arg6[%c5] : memref<8xf32, #tpu.memory_space<smem>>
    %347 = vector.broadcast %346 : f32 to vector<1x1xf32>
    %348 = arith.mulf %345, %347 : vector<1x1xf32>
    %349 = vector.broadcast %338 : vector<1x1xf32> to vector<8x32xf32>
    %350 = arith.subf %325, %349 : vector<8x32xf32>
    %351 = vector.broadcast %348 : vector<1x1xf32> to vector<8x32xf32>
    %352 = arith.mulf %350, %351 : vector<8x32xf32>
    %c5_104 = arith.constant 5 : index
    %353 = memref.load %arg7[%c5_104] : memref<8xf32, #tpu.memory_space<smem>>
    %354 = vector.broadcast %353 : f32 to vector<8x32xf32>
    %355 = arith.addf %352, %354 : vector<8x32xf32>
    %356 = arith.truncf %355 : vector<8x32xf32> to vector<8x32xbf16>
    %cst_105 = arith.constant dense<0.000000e+00> : vector<8x128xf32>
    %357 = tpu.matmul %356, %15, %cst_105 {dimension_numbers = #tpu.dot_dimension_numbers<[1], [0], [0], [1], [0, 0, 1, 1], [], []>} : vector<8x32xbf16>, vector<32x128xbf16>, vector<8x128xf32> -> vector<8x128xf32>
    %358 = vector.broadcast %16 : vector<1x128xf32> to vector<8x128xf32>
    %359 = arith.addf %357, %358 : vector<8x128xf32>
    %c40 = arith.constant 40 : index
    %c0_106 = arith.constant 0 : index
    %360 = vector.load %arg10[%c40, %c0_106] : memref<64x128xf32, #tpu.memory_space<vmem>>, vector<8x128xf32>
    tpu.vector_store %arg10[%c40, %c0_106], %359 {strides = array<i32>} : memref<64x128xf32, #tpu.memory_space<vmem>>, vector<8x128xf32>,
    %361 = vector.extract_strided_slice %13 {offsets = [48, 0], sizes = [8, 128], strides = [1, 1]} : vector<64x128xf32> to vector<8x128xf32>
    %362 = arith.truncf %325 : vector<8x32xf32> to vector<8x32xbf16>
    %cst_107 = arith.constant dense<0.000000e+00> : vector<8x128xf32>
    %363 = tpu.matmul %362, %14, %cst_107 {dimension_numbers = #tpu.dot_dimension_numbers<[1], [0], [0], [1], [0, 0, 1, 1], [], []>} : vector<8x32xbf16>, vector<32x128xbf16>, vector<8x128xf32> -> vector<8x128xf32>
    %364 = arith.addf %361, %363 : vector<8x128xf32>
    %365 = arith.mulf %364, %25 : vector<8x128xf32>
    %366 = math.tanh %365 : vector<8x128xf32>
    %cst_108 = arith.constant 5.000000e-01 : f32
    %367 = vector.broadcast %cst_108 : f32 to vector<8x128xf32>
    %368 = arith.mulf %367, %366 : vector<8x128xf32>
    %cst_109 = arith.constant 5.000000e-01 : f32
    %369 = vector.broadcast %cst_109 : f32 to vector<8x128xf32>
    %370 = arith.addf %368, %369 : vector<8x128xf32>
    %371 = arith.select %22, %366, %370 : vector<8x128xi1>, vector<8x128xf32>
    %372 = vector.extract_strided_slice %371 {offsets = [0, 0], sizes = [8, 32], strides = [1, 1]} : vector<8x128xf32> to vector<8x32xf32>
    %373 = vector.extract_strided_slice %371 {offsets = [0, 32], sizes = [8, 32], strides = [1, 1]} : vector<8x128xf32> to vector<8x32xf32>
    %374 = vector.extract_strided_slice %371 {offsets = [0, 64], sizes = [8, 32], strides = [1, 1]} : vector<8x128xf32> to vector<8x32xf32>
    %375 = vector.extract_strided_slice %371 {offsets = [0, 96], sizes = [8, 32], strides = [1, 1]} : vector<8x128xf32> to vector<8x32xf32>
    %376 = arith.mulf %373, %323 : vector<8x32xf32>
    %377 = arith.mulf %372, %374 : vector<8x32xf32>
    %378 = arith.addf %376, %377 : vector<8x32xf32>
    %379 = math.tanh %378 : vector<8x32xf32>
    %380 = arith.mulf %375, %379 : vector<8x32xf32>
    %cst_110 = arith.constant 0.000000e+00 : f32
    %381 = vector.broadcast %cst_110 : f32 to vector<8x32xf32>
    %382 = arith.select %28, %380, %381 : vector<8x32xi1>, vector<8x32xf32>
    %cst_111 = arith.constant dense<0.000000e+00> : vector<8xf32>
    %383 = vector.multi_reduction <add>, %382, %cst_111 [1] : vector<8x32xf32> to vector<8xf32>
    %384 = vector.shape_cast %383 : vector<8xf32> to vector<8x1xf32>
    %cst_112 = arith.constant dense<0.000000e+00> : vector<1xf32>
    %385 = vector.multi_reduction <add>, %384, %cst_112 [0] : vector<8x1xf32> to vector<1xf32>
    %386 = vector.shape_cast %385 : vector<1xf32> to vector<1x1xf32>
    %387 = arith.mulf %382, %382 : vector<8x32xf32>
    %cst_113 = arith.constant dense<0.000000e+00> : vector<8xf32>
    %388 = vector.multi_reduction <add>, %387, %cst_113 [1] : vector<8x32xf32> to vector<8xf32>
    %389 = vector.shape_cast %388 : vector<8xf32> to vector<8x1xf32>
    %cst_114 = arith.constant dense<0.000000e+00> : vector<1xf32>
    %390 = vector.multi_reduction <add>, %389, %cst_114 [0] : vector<8x1xf32> to vector<1xf32>
    %391 = vector.shape_cast %390 : vector<1xf32> to vector<1x1xf32>
    %cst_115 = arith.constant 7.812500e-03 : f32
    %392 = vector.broadcast %cst_115 : f32 to vector<1x1xf32>
    %393 = arith.mulf %386, %392 : vector<1x1xf32>
    %cst_116 = arith.constant 7.812500e-03 : f32
    %394 = vector.broadcast %cst_116 : f32 to vector<1x1xf32>
    %395 = arith.mulf %391, %394 : vector<1x1xf32>
    %396 = arith.mulf %393, %393 : vector<1x1xf32>
    %397 = arith.subf %395, %396 : vector<1x1xf32>
    %cst_117 = arith.constant 9.99999974E-6 : f32
    %398 = vector.broadcast %cst_117 : f32 to vector<1x1xf32>
    %399 = arith.addf %397, %398 : vector<1x1xf32>
    %400 = math.rsqrt %399 : vector<1x1xf32>
    %c6 = arith.constant 6 : index
    %401 = memref.load %arg6[%c6] : memref<8xf32, #tpu.memory_space<smem>>
    %402 = vector.broadcast %401 : f32 to vector<1x1xf32>
    %403 = arith.mulf %400, %402 : vector<1x1xf32>
    %404 = vector.broadcast %393 : vector<1x1xf32> to vector<8x32xf32>
    %405 = arith.subf %380, %404 : vector<8x32xf32>
    %406 = vector.broadcast %403 : vector<1x1xf32> to vector<8x32xf32>
    %407 = arith.mulf %405, %406 : vector<8x32xf32>
    %c6_118 = arith.constant 6 : index
    %408 = memref.load %arg7[%c6_118] : memref<8xf32, #tpu.memory_space<smem>>
    %409 = vector.broadcast %408 : f32 to vector<8x32xf32>
    %410 = arith.addf %407, %409 : vector<8x32xf32>
    %411 = arith.truncf %410 : vector<8x32xf32> to vector<8x32xbf16>
    %cst_119 = arith.constant dense<0.000000e+00> : vector<8x128xf32>
    %412 = tpu.matmul %411, %15, %cst_119 {dimension_numbers = #tpu.dot_dimension_numbers<[1], [0], [0], [1], [0, 0, 1, 1], [], []>} : vector<8x32xbf16>, vector<32x128xbf16>, vector<8x128xf32> -> vector<8x128xf32>
    %413 = vector.broadcast %16 : vector<1x128xf32> to vector<8x128xf32>
    %414 = arith.addf %412, %413 : vector<8x128xf32>
    %c48 = arith.constant 48 : index
    %c0_120 = arith.constant 0 : index
    %415 = vector.load %arg10[%c48, %c0_120] : memref<64x128xf32, #tpu.memory_space<vmem>>, vector<8x128xf32>
    tpu.vector_store %arg10[%c48, %c0_120], %414 {strides = array<i32>} : memref<64x128xf32, #tpu.memory_space<vmem>>, vector<8x128xf32>,
    %416 = vector.extract_strided_slice %13 {offsets = [56, 0], sizes = [8, 128], strides = [1, 1]} : vector<64x128xf32> to vector<8x128xf32>
    %417 = arith.truncf %380 : vector<8x32xf32> to vector<8x32xbf16>
    %cst_121 = arith.constant dense<0.000000e+00> : vector<8x128xf32>
    %418 = tpu.matmul %417, %14, %cst_121 {dimension_numbers = #tpu.dot_dimension_numbers<[1], [0], [0], [1], [0, 0, 1, 1], [], []>} : vector<8x32xbf16>, vector<32x128xbf16>, vector<8x128xf32> -> vector<8x128xf32>
    %419 = arith.addf %416, %418 : vector<8x128xf32>
    %420 = arith.mulf %419, %25 : vector<8x128xf32>
    %421 = math.tanh %420 : vector<8x128xf32>
    %cst_122 = arith.constant 5.000000e-01 : f32
    %422 = vector.broadcast %cst_122 : f32 to vector<8x128xf32>
    %423 = arith.mulf %422, %421 : vector<8x128xf32>
    %cst_123 = arith.constant 5.000000e-01 : f32
    %424 = vector.broadcast %cst_123 : f32 to vector<8x128xf32>
    %425 = arith.addf %423, %424 : vector<8x128xf32>
    %426 = arith.select %22, %421, %425 : vector<8x128xi1>, vector<8x128xf32>
    %427 = vector.extract_strided_slice %426 {offsets = [0, 0], sizes = [8, 32], strides = [1, 1]} : vector<8x128xf32> to vector<8x32xf32>
    %428 = vector.extract_strided_slice %426 {offsets = [0, 32], sizes = [8, 32], strides = [1, 1]} : vector<8x128xf32> to vector<8x32xf32>
    %429 = vector.extract_strided_slice %426 {offsets = [0, 64], sizes = [8, 32], strides = [1, 1]} : vector<8x128xf32> to vector<8x32xf32>
    %430 = vector.extract_strided_slice %426 {offsets = [0, 96], sizes = [8, 32], strides = [1, 1]} : vector<8x128xf32> to vector<8x32xf32>
    %431 = arith.mulf %428, %378 : vector<8x32xf32>
    %432 = arith.mulf %427, %429 : vector<8x32xf32>
    %433 = arith.addf %431, %432 : vector<8x32xf32>
    %434 = math.tanh %433 : vector<8x32xf32>
    %435 = arith.mulf %430, %434 : vector<8x32xf32>
    %cst_124 = arith.constant 0.000000e+00 : f32
    %436 = vector.broadcast %cst_124 : f32 to vector<8x32xf32>
    %437 = arith.select %28, %435, %436 : vector<8x32xi1>, vector<8x32xf32>
    %cst_125 = arith.constant dense<0.000000e+00> : vector<8xf32>
    %438 = vector.multi_reduction <add>, %437, %cst_125 [1] : vector<8x32xf32> to vector<8xf32>
    %439 = vector.shape_cast %438 : vector<8xf32> to vector<8x1xf32>
    %cst_126 = arith.constant dense<0.000000e+00> : vector<1xf32>
    %440 = vector.multi_reduction <add>, %439, %cst_126 [0] : vector<8x1xf32> to vector<1xf32>
    %441 = vector.shape_cast %440 : vector<1xf32> to vector<1x1xf32>
    %442 = arith.mulf %437, %437 : vector<8x32xf32>
    %cst_127 = arith.constant dense<0.000000e+00> : vector<8xf32>
    %443 = vector.multi_reduction <add>, %442, %cst_127 [1] : vector<8x32xf32> to vector<8xf32>
    %444 = vector.shape_cast %443 : vector<8xf32> to vector<8x1xf32>
    %cst_128 = arith.constant dense<0.000000e+00> : vector<1xf32>
    %445 = vector.multi_reduction <add>, %444, %cst_128 [0] : vector<8x1xf32> to vector<1xf32>
    %446 = vector.shape_cast %445 : vector<1xf32> to vector<1x1xf32>
    %cst_129 = arith.constant 7.812500e-03 : f32
    %447 = vector.broadcast %cst_129 : f32 to vector<1x1xf32>
    %448 = arith.mulf %441, %447 : vector<1x1xf32>
    %cst_130 = arith.constant 7.812500e-03 : f32
    %449 = vector.broadcast %cst_130 : f32 to vector<1x1xf32>
    %450 = arith.mulf %446, %449 : vector<1x1xf32>
    %451 = arith.mulf %448, %448 : vector<1x1xf32>
    %452 = arith.subf %450, %451 : vector<1x1xf32>
    %cst_131 = arith.constant 9.99999974E-6 : f32
    %453 = vector.broadcast %cst_131 : f32 to vector<1x1xf32>
    %454 = arith.addf %452, %453 : vector<1x1xf32>
    %455 = math.rsqrt %454 : vector<1x1xf32>
    %c7 = arith.constant 7 : index
    %456 = memref.load %arg6[%c7] : memref<8xf32, #tpu.memory_space<smem>>
    %457 = vector.broadcast %456 : f32 to vector<1x1xf32>
    %458 = arith.mulf %455, %457 : vector<1x1xf32>
    %459 = vector.broadcast %448 : vector<1x1xf32> to vector<8x32xf32>
    %460 = arith.subf %435, %459 : vector<8x32xf32>
    %461 = vector.broadcast %458 : vector<1x1xf32> to vector<8x32xf32>
    %462 = arith.mulf %460, %461 : vector<8x32xf32>
    %c7_132 = arith.constant 7 : index
    %463 = memref.load %arg7[%c7_132] : memref<8xf32, #tpu.memory_space<smem>>
    %464 = vector.broadcast %463 : f32 to vector<8x32xf32>
    %465 = arith.addf %462, %464 : vector<8x32xf32>
    %466 = arith.truncf %465 : vector<8x32xf32> to vector<8x32xbf16>
    %cst_133 = arith.constant dense<0.000000e+00> : vector<8x128xf32>
    %467 = tpu.matmul %466, %15, %cst_133 {dimension_numbers = #tpu.dot_dimension_numbers<[1], [0], [0], [1], [0, 0, 1, 1], [], []>} : vector<8x32xbf16>, vector<32x128xbf16>, vector<8x128xf32> -> vector<8x128xf32>
    %468 = vector.broadcast %16 : vector<1x128xf32> to vector<8x128xf32>
    %469 = arith.addf %467, %468 : vector<8x128xf32>
    %c56 = arith.constant 56 : index
    %c0_134 = arith.constant 0 : index
    %470 = vector.load %arg10[%c56, %c0_134] : memref<64x128xf32, #tpu.memory_space<vmem>>, vector<8x128xf32>
    tpu.vector_store %arg10[%c56, %c0_134], %469 {strides = array<i32>} : memref<64x128xf32, #tpu.memory_space<vmem>>, vector<8x128xf32>,
    return
  }
}

</mosaic_0001>

<llo_original>
// kernel: timeseries_decoder_forward.1
$region0: #{timeseries_decoder_forward.1}
  #allocation0 [shape = 'u32[]', space=smem, size = 0x4, offset = 0x4, fixed_abs, tag = 'smem constant byte address 0x4 - core index']
  #allocation1 [shape = 'u32[144,128]{1,0:T(1,128)}', space=vmem, size = 0x12000, scoped, tag = 'internal scratch']
  %s0 = inlined_call_operand.vmem [shape: bf16[64,32], index: 0, kind: input, shape index: {}]
  %s1 = inlined_call_operand.vmem [shape: bf16[32,32], index: 1, kind: input, shape index: {}]
  %s2 = inlined_call_operand.vmem [shape: f32[1,32], index: 2, kind: input, shape index: {}]
  %s3 = inlined_call_operand.vmem [shape: bf16[32,128], index: 3, kind: input, shape index: {}]
  %s4 = inlined_call_operand.vmem [shape: bf16[32,128], index: 4, kind: input, shape index: {}]
  %s5 = inlined_call_operand.vmem [shape: f32[1,128], index: 5, kind: input, shape index: {}]
  %s6 = inlined_call_operand.vmem [shape: f32[8], index: 6, kind: input, shape index: {}]
  %s7 = inlined_call_operand.vmem [shape: f32[8], index: 7, kind: input, shape index: {}]
  %s8 = inlined_call_operand.vmem [shape: bf16[32,128], index: 8, kind: input, shape index: {}]
  %s9 = inlined_call_operand.vmem [shape: f32[1,128], index: 9, kind: input, shape index: {}]
  %s10 = inlined_call_operand.vmem [shape: f32[64,128], index: 10, kind: output, shape index: {}]
  %s11 = sld [smem:[#allocation0]]
  $region58: #{timeseries_decoder_forward.1} parent=0
    _
  %s13 = ssub.s32 1, %s11
  %s14 = scalar_select 0, %s13, %s11
  $region1: #{timeseries_decoder_forward.1} parent=0
    #allocation2 [shape = 'u8[512]{0}', space=smem, size = 0x200, scoped, tag = 'input window, operand 6, single buffered']
    #allocation3 [shape = 's32[1]{0}', space=sflag, size = 0x4, scoped, tag = 'scoped memory for timeseries_decoder_forward.1']
    #allocation4 [shape = 'u8[512]{0}', space=smem, size = 0x200, scoped, tag = 'input window, operand 7, single buffered']
    #allocation5 [shape = 's32[1]{0}', space=sflag, size = 0x4, scoped, tag = 'scoped memory for timeseries_decoder_forward.1']
    %15 = vsyncpa [#allocation3], 0
    %16 = vsyncpa [#allocation5], 0
    // Predicated region
    $region2: #{timeseries_decoder_forward.1} parent=1 // pred_check
      _
    $region3: #{timeseries_decoder_forward.1} parent=1 // pred_check_branch
      %18 = sbr.rel (0) target = $region5
    $region4: #{timeseries_decoder_forward.1} parent=1 // pred_region
      _
    $region5: #{timeseries_decoder_forward.1} parent=1 // pred_fallthru
      _
    // Predicated region
    $region6: #{timeseries_decoder_forward.1} parent=1 // pred_check
      _
    $region7: #{timeseries_decoder_forward.1} parent=1 // pred_check_branch
      %20 = sbr.rel (0) target = $region9
    $region8: #{timeseries_decoder_forward.1} parent=1 // pred_region
      _
    $region9: #{timeseries_decoder_forward.1} parent=1 // pred_fallthru
      _
    // Predicated region
    $region10: #{timeseries_decoder_forward.1} parent=1 // pred_check
      _
    $region11: #{timeseries_decoder_forward.1} parent=1 // pred_check_branch
      %22 = sbr.rel (0) target = $region13
    $region12: #{timeseries_decoder_forward.1} parent=1 // pred_region
      _
    $region13: #{timeseries_decoder_forward.1} parent=1 // pred_fallthru
      _
    // Predicated region
    $region14: #{timeseries_decoder_forward.1} parent=1 // pred_check
      _
    $region15: #{timeseries_decoder_forward.1} parent=1 // pred_check_branch
      %24 = sbr.rel (0) target = $region17
    $region16: #{timeseries_decoder_forward.1} parent=1 // pred_region
      _
    $region17: #{timeseries_decoder_forward.1} parent=1 // pred_fallthru
      _
    // Predicated region
    $region18: #{timeseries_decoder_forward.1} parent=1 // pred_check
      _
    $region19: #{timeseries_decoder_forward.1} parent=1 // pred_check_branch
      %26 = sbr.rel (0) target = $region21
    $region20: #{timeseries_decoder_forward.1} parent=1 // pred_region
      _
    $region21: #{timeseries_decoder_forward.1} parent=1 // pred_fallthru
      _
    // Predicated region
    $region22: #{timeseries_decoder_forward.1} parent=1 // pred_check
      _
    $region23: #{timeseries_decoder_forward.1} parent=1 // pred_check_branch
      %28 = sbr.rel (0) target = $region25
    $region24: #{timeseries_decoder_forward.1} parent=1 // pred_region
      _
    $region25: #{timeseries_decoder_forward.1} parent=1 // pred_fallthru
      _
    // Predicated region
    $region26: #{timeseries_decoder_forward.1} parent=1 // pred_check
      _
    $region27: #{timeseries_decoder_forward.1} parent=1 // pred_check_branch
      %30 = sbr.rel (0) target = $region29
    $region28: #{timeseries_decoder_forward.1} parent=1 // pred_region
      %s32 = ssub.s32 16, 16
      %33 = vsyncadd [#allocation3], %s32
      %s35 = sshll.u32 %s6, 4
      %s36 = int_to_ptr.vmem [resolvable:$true] %s35
      %38 = dma.vmem_to_smem %s36, 16, [#allocation2], [#allocation3]
    $region29: #{timeseries_decoder_forward.1} parent=1 // pred_fallthru
      _
    // Predicated region
    $region30: #{timeseries_decoder_forward.1} parent=1 // pred_check
      _
    $region31: #{timeseries_decoder_forward.1} parent=1 // pred_check_branch
      %40 = sbr.rel (0) target = $region33
    $region32: #{timeseries_decoder_forward.1} parent=1 // pred_region
      %s42 = ssub.s32 16, 16
      %43 = vsyncadd [#allocation5], %s42
      %s45 = sshll.u32 %s7, 4
      %s46 = int_to_ptr.vmem [resolvable:$true] %s45
      %48 = dma.vmem_to_smem %s46, 16, [#allocation4], [#allocation5]
    $region33: #{timeseries_decoder_forward.1} parent=1 // pred_fallthru
      _
    // Predicated region
    $region34: #{timeseries_decoder_forward.1} parent=1 // pred_check
      _
    $region35: #{timeseries_decoder_forward.1} parent=1 // pred_check_branch
      %50 = sbr.rel (0) target = $region37
    $region36: #{timeseries_decoder_forward.1} parent=1 // pred_region
      _
    $region37: #{timeseries_decoder_forward.1} parent=1 // pred_fallthru
      _
    // Predicated region
    $region38: #{timeseries_decoder_forward.1} parent=1 // pred_check
      _
    $region39: #{timeseries_decoder_forward.1} parent=1 // pred_check_branch
      %52 = sbr.rel (0) target = $region41
    $region40: #{timeseries_decoder_forward.1} parent=1 // pred_region
      _
    $region41: #{timeseries_decoder_forward.1} parent=1 // pred_fallthru
      _
    // Predicated region
    $region42: #{timeseries_decoder_forward.1} parent=1 // pred_check
      _
    $region43: #{timeseries_decoder_forward.1} parent=1 // pred_check_branch
      %54 = sbr.rel (0) target = $region45
    $region44: #{timeseries_decoder_forward.1} parent=1 // pred_region
      %55 = dma.done [#allocation3], 16
    $region45: #{timeseries_decoder_forward.1} parent=1 // pred_fallthru
      _
    // Predicated region
    $region46: #{timeseries_decoder_forward.1} parent=1 // pred_check
      _
    $region47: #{timeseries_decoder_forward.1} parent=1 // pred_check_branch
      %57 = sbr.rel (0) target = $region49
    $region48: #{timeseries_decoder_forward.1} parent=1 // pred_region
      %58 = dma.done [#allocation5], 16
    $region49: #{timeseries_decoder_forward.1} parent=1 // pred_fallthru
      _
    %59 = sfence
    %v61 = vld [vmem:[%s0] sm:$0xf]
    %v62 = vld [vmem:[%s0 + $0x4] sm:$0xf]
    %v63 = vld [vmem:[%s0 + $0x8] sm:$0xf]
    %v64 = vld [vmem:[%s0 + $0xc] sm:$0xf]
    %v65 = vld [vmem:[%s0 + $0x10] sm:$0xf]
    %v66 = vld [vmem:[%s0 + $0x14] sm:$0xf]
    %v67 = vld [vmem:[%s0 + $0x18] sm:$0xf]
    %v68 = vld [vmem:[%s0 + $0x1c] sm:$0xf]
    %v69 = vld [vmem:[%s1] sm:$0xf]
    %v70 = vld [vmem:[%s1 + $0x4] sm:$0xf]
    %v71 = vld [vmem:[%s1 + $0x8] sm:$0xf]
    %v72 = vld [vmem:[%s1 + $0xc] sm:$0xf]
    %v73 = vld [vmem:[%s2] sm:$0x1]
    %v75 = vlaneseq
    %v76 = vshrl.u32 %v75, 7
    %v77 = vsub.s32 0, %v76
    %v78 = vrot.slane %v73, %v77
    %v88 = vunpack.c.l.b16 %v61
    %v89 = vunpack.c.l.b16 %v62
    %v90 = vunpack.c.l.b16 %v63
    %v91 = vunpack.c.l.b16 %v64
    %v92 = vunpack.c.l.b16 %v65
    %v93 = vunpack.c.l.b16 %v66
    %v94 = vunpack.c.l.b16 %v67
    %v95 = vunpack.c.l.b16 %v68
    %v96 = vpack.c.b16 %v89, %v88
    %v97 = vpack.c.b16 %v91, %v90
    %v98 = vpack.c.b16 %v93, %v92
    %v99 = vpack.c.b16 %v95, %v94
    %v104 = vunpack.c.l.b16 %v69
    %v105 = vunpack.c.l.b16 %v70
    %v106 = vunpack.c.l.b16 %v71
    %v107 = vunpack.c.l.b16 %v72
    %v108 = vpack.c.b16 %v105, %v104
    %v109 = vpack.c.b16 %v107, %v106
    %vm112 = vcmask 261120
    %v114 = vsel %vm112, %v96, 0
    %v117 = vsel %vm112, %v97, 0
    %v120 = vsel %vm112, %v98, 0
    %v123 = vsel %vm112, %v99, 0
    %125 = vmatprep.subr.bf16.mxu0 0
    %126 = vmatpush1.bf16.msra.mxu0 %v108
    %127 = vmatprep.subr.bf16.mxu0 0
    %128 = vmatpush1.bf16.msra.mxu0 %v109
    %129 = vmatprep.subr.bf16.mxu0 0
    %130 = vmatpush1.bf16.msra.mxu0 0
    %131 = vmatprep.subr.bf16.mxu0 0
    %132 = vmatpush1.bf16.msra.mxu0 0
    %133 = vmatprep.subr.bf16.mxu0 0
    %134 = vmatpush1.bf16.msra.mxu0 0
    %135 = vmatprep.subr.bf16.mxu0 0
    %136 = vmatpush1.bf16.msra.mxu0 0
    %137 = vmatprep.subr.bf16.mxu0 0
    %138 = vmatpush1.bf16.msra.mxu0 0
    %139 = vmatprep.subr.bf16.mxu0 0
    %140 = vmatpush1.bf16.msra.mxu0 0
    %141 = vmatprep.subr.bf16.mxu0 0
    %142 = vmatpush1.bf16.msra.mxu0 0
    %143 = vmatprep.subr.bf16.mxu0 0
    %144 = vmatpush1.bf16.msra.mxu0 0
    %145 = vmatprep.subr.bf16.mxu0 0
    %146 = vmatpush1.bf16.msra.mxu0 0
    %147 = vmatprep.subr.bf16.mxu0 0
    %148 = vmatpush1.bf16.msra.mxu0 0
    %149 = vmatprep.subr.bf16.mxu0 0
    %150 = vmatpush1.bf16.msra.mxu0 0
    %151 = vmatprep.subr.bf16.mxu0 0
    %152 = vmatpush1.bf16.msra.mxu0 0
    %153 = vmatprep.subr.bf16.mxu0 0
    %154 = vmatpush1.bf16.msra.mxu0 0
    %155 = vmatprep.subr.bf16.mxu0 0
    %156 = vmatpush1.bf16.msra.mxu0 0
    %157 = vmatprep.mubr.bf16.mxu0 0
    %158 = vmatmul.mubr.bf16.gmra.mrb[0].mxu0 %v114
    %v159 = vpop.f32.mrb[0].mxu0
    %v160 = vadd.f32 %v78, %v159
    %v161 = vpop.f32.mrb[0].mxu0
    %v162 = vpop.f32.mrb[0].mxu0
    %v163 = vadd.f32 %v78, %v162
    %v164 = vpop.f32.mrb[0].mxu0
    %165 = vmatprep.mubr.bf16.mxu0 0
    %166 = vmatmul.mubr.bf16.gmra.mrb[0].mxu0 %v117
    %v167 = vpop.f32.mrb[0].mxu0
    %v168 = vadd.f32 %v78, %v167
    %v169 = vpop.f32.mrb[0].mxu0
    %v170 = vpop.f32.mrb[0].mxu0
    %v171 = vadd.f32 %v78, %v170
    %v172 = vpop.f32.mrb[0].mxu0
    %173 = vmatprep.mubr.bf16.mxu0 0
    %174 = vmatmul.mubr.bf16.gmra.mrb[0].mxu0 %v120
    %v175 = vpop.f32.mrb[0].mxu0
    %v176 = vadd.f32 %v78, %v175
    %v177 = vpop.f32.mrb[0].mxu0
    %v178 = vpop.f32.mrb[0].mxu0
    %v179 = vadd.f32 %v78, %v178
    %v180 = vpop.f32.mrb[0].mxu0
    %181 = vmatprep.mubr.bf16.mxu0 0
    %182 = vmatmul.mubr.bf16.gmra.mrb[0].mxu0 %v123
    %v183 = vpop.f32.mrb[0].mxu0
    %v184 = vadd.f32 %v78, %v183
    %v185 = vpop.f32.mrb[0].mxu0
    %v186 = vpop.f32.mrb[0].mxu0
    %v187 = vadd.f32 %v78, %v186
    %v188 = vpop.f32.mrb[0].mxu0
    %189 = vdwg.mxu0
    %v190 = vmax.f32 %v160, 0.0
    %v191 = vmax.f32 %v163, 0.0
    %v192 = vmax.f32 %v168, 0.0
    %v193 = vmax.f32 %v171, 0.0
    %v194 = vmax.f32 %v176, 0.0
    %v195 = vmax.f32 %v179, 0.0
    %v196 = vmax.f32 %v184, 0.0
    %v197 = vmax.f32 %v187, 0.0
    %v198 = vpack.c.bf16 %v191, %v190
    %v199 = vpack.c.bf16 %v193, %v192
    %v200 = vpack.c.bf16 %v195, %v194
    %v201 = vpack.c.bf16 %v197, %v196
    %v202 = vld [vmem:[%s3] sm:$0xf]
    %v203 = vld [vmem:[%s3 + $0x4] sm:$0xf]
    %v204 = vld [vmem:[%s3 + $0x8] sm:$0xf]
    %v205 = vld [vmem:[%s3 + $0xc] sm:$0xf]
    %v206 = vld [vmem:[%s5] sm:$0x1]
    %v208 = vlaneseq
    %v209 = vshrl.u32 %v208, 7
    %v210 = vsub.s32 0, %v209
    %v211 = vrot.slane %v206, %v210
    %v217 = vunpack.c.l.b16 %v202
    %v218 = vunpack.c.l.b16 %v203
    %v219 = vunpack.c.l.b16 %v204
    %v220 = vunpack.c.l.b16 %v205
    %v221 = vpack.c.b16 %v218, %v217
    %v222 = vpack.c.b16 %v220, %v219
    %v226 = vsel %vm112, %v198, 0
    %v229 = vsel %vm112, %v199, 0
    %v232 = vsel %vm112, %v200, 0
    %v235 = vsel %vm112, %v201, 0
    %237 = vmatprep.subr.bf16.mxu0 0
    %238 = vmatpush1.bf16.msra.mxu0 %v221
    %239 = vmatprep.subr.bf16.mxu0 0
    %240 = vmatpush1.bf16.msra.mxu0 %v222
    %241 = vmatprep.subr.bf16.mxu0 0
    %242 = vmatpush1.bf16.msra.mxu0 0
    %243 = vmatprep.subr.bf16.mxu0 0
    %244 = vmatpush1.bf16.msra.mxu0 0
    %245 = vmatprep.subr.bf16.mxu0 0
    %246 = vmatpush1.bf16.msra.mxu0 0
    %247 = vmatprep.subr.bf16.mxu0 0
    %248 = vmatpush1.bf16.msra.mxu0 0
    %249 = vmatprep.subr.bf16.mxu0 0
    %250 = vmatpush1.bf16.msra.mxu0 0
    %251 = vmatprep.subr.bf16.mxu0 0
    %252 = vmatpush1.bf16.msra.mxu0 0
    %253 = vmatprep.subr.bf16.mxu0 0
    %254 = vmatpush1.bf16.msra.mxu0 0
    %255 = vmatprep.subr.bf16.mxu0 0
    %256 = vmatpush1.bf16.msra.mxu0 0
    %257 = vmatprep.subr.bf16.mxu0 0
    %258 = vmatpush1.bf16.msra.mxu0 0
    %259 = vmatprep.subr.bf16.mxu0 0
    %260 = vmatpush1.bf16.msra.mxu0 0
    %261 = vmatprep.subr.bf16.mxu0 0
    %262 = vmatpush1.bf16.msra.mxu0 0
    %263 = vmatprep.subr.bf16.mxu0 0
    %264 = vmatpush1.bf16.msra.mxu0 0
    %265 = vmatprep.subr.bf16.mxu0 0
    %266 = vmatpush1.bf16.msra.mxu0 0
    %267 = vmatprep.subr.bf16.mxu0 0
    %268 = vmatpush1.bf16.msra.mxu0 0
    %269 = vmatprep.mubr.bf16.mxu0 0
    %270 = vmatmul.mubr.bf16.gmra.mrb[0].mxu0 %v226
    %v271 = vpop.f32.mrb[0].mxu0
    %v272 = vadd.f32 %v211, %v271
    %v273 = vpop.f32.mrb[0].mxu0
    %v274 = vpop.f32.mrb[0].mxu0
    %v275 = vadd.f32 %v211, %v274
    %v276 = vpop.f32.mrb[0].mxu0
    %277 = vmatprep.mubr.bf16.mxu0 0
    %278 = vmatmul.mubr.bf16.gmra.mrb[0].mxu0 %v229
    %v279 = vpop.f32.mrb[0].mxu0
    %v280 = vadd.f32 %v211, %v279
    %v281 = vpop.f32.mrb[0].mxu0
    %v282 = vpop.f32.mrb[0].mxu0
    %v283 = vadd.f32 %v211, %v282
    %v284 = vpop.f32.mrb[0].mxu0
    %285 = vmatprep.mubr.bf16.mxu0 0
    %286 = vmatmul.mubr.bf16.gmra.mrb[0].mxu0 %v232
    %v287 = vpop.f32.mrb[0].mxu0
    %v288 = vadd.f32 %v211, %v287
    %v289 = vpop.f32.mrb[0].mxu0
    %v290 = vpop.f32.mrb[0].mxu0
    %v291 = vadd.f32 %v211, %v290
    %v292 = vpop.f32.mrb[0].mxu0
    %293 = vmatprep.mubr.bf16.mxu0 0
    %294 = vmatmul.mubr.bf16.gmra.mrb[0].mxu0 %v235
    %v295 = vpop.f32.mrb[0].mxu0
    %v296 = vadd.f32 %v211, %v295
    %v297 = vpop.f32.mrb[0].mxu0
    %v298 = vpop.f32.mrb[0].mxu0
    %v299 = vadd.f32 %v211, %v298
    %v300 = vpop.f32.mrb[0].mxu0
    %301 = vdwg.mxu0
    %v302 = vld [vmem:[%s4] sm:$0xf]
    %v303 = vld [vmem:[%s4 + $0x4] sm:$0xf]
    %v304 = vld [vmem:[%s4 + $0x8] sm:$0xf]
    %v305 = vld [vmem:[%s4 + $0xc] sm:$0xf]
    %v306 = vld [vmem:[%s8] sm:$0xf]
    %v307 = vld [vmem:[%s8 + $0x4] sm:$0xf]
    %v308 = vld [vmem:[%s8 + $0x8] sm:$0xf]
    %v309 = vld [vmem:[%s8 + $0xc] sm:$0xf]
    %v310 = vld [vmem:[%s9] sm:$0x1]
    %v311 = vlaneseq
    %v312 = vand.u32 %v311, 127
    %vm313 = vcmp.ge.s32.totalorder %v312, 64
    %vm314 = vcmp.lt.s32.totalorder %v312, 96
    %vm315 = vmand %vm313, %vm314
    %v316 = vsel %vm315, 1.0, 0.5
    %v317 = vlaneseq
    %v318 = vshrl.u32 %v317, 7
    %vm319 = vcmp.lt.s32.totalorder %v318, 4
    %v324 = vunpack.c.l.b16 %v302
    %v325 = vunpack.c.l.b16 %v303
    %v326 = vunpack.c.l.b16 %v304
    %v327 = vunpack.c.l.b16 %v305
    %v328 = vpack.c.b16 %v325, %v324
    %v329 = vpack.c.b16 %v327, %v326
    %v333 = vsel %vm112, 0, 0
    %335 = vmatprep.subr.bf16.mxu0 0
    %336 = vmatpush1.bf16.msra.mxu0 %v328
    %337 = vmatprep.subr.bf16.mxu0 0
    %338 = vmatpush1.bf16.msra.mxu0 %v329
    %339 = vmatprep.subr.bf16.mxu0 0
    %340 = vmatpush1.bf16.msra.mxu0 0
    %341 = vmatprep.subr.bf16.mxu0 0
    %342 = vmatpush1.bf16.msra.mxu0 0
    %343 = vmatprep.subr.bf16.mxu0 0
    %344 = vmatpush1.bf16.msra.mxu0 0
    %345 = vmatprep.subr.bf16.mxu0 0
    %346 = vmatpush1.bf16.msra.mxu0 0
    %347 = vmatprep.subr.bf16.mxu0 0
    %348 = vmatpush1.bf16.msra.mxu0 0
    %349 = vmatprep.subr.bf16.mxu0 0
    %350 = vmatpush1.bf16.msra.mxu0 0
    %351 = vmatprep.subr.bf16.mxu0 0
    %352 = vmatpush1.bf16.msra.mxu0 0
    %353 = vmatprep.subr.bf16.mxu0 0
    %354 = vmatpush1.bf16.msra.mxu0 0
    %355 = vmatprep.subr.bf16.mxu0 0
    %356 = vmatpush1.bf16.msra.mxu0 0
    %357 = vmatprep.subr.bf16.mxu0 0
    %358 = vmatpush1.bf16.msra.mxu0 0
    %359 = vmatprep.subr.bf16.mxu0 0
    %360 = vmatpush1.bf16.msra.mxu0 0
    %361 = vmatprep.subr.bf16.mxu0 0
    %362 = vmatpush1.bf16.msra.mxu0 0
    %363 = vmatprep.subr.bf16.mxu0 0
    %364 = vmatpush1.bf16.msra.mxu0 0
    %365 = vmatprep.subr.bf16.mxu0 0
    %366 = vmatpush1.bf16.msra.mxu0 0
    %367 = vmatprep.mubr.bf16.mxu0 0
    %368 = vmatmul.mubr.bf16.gmra.mrb[0].mxu0 %v333
    %v369 = vpop.f32.mrb[0].mxu0
    %v370 = vadd.f32 0.0, %v369
    %v371 = vpop.f32.mrb[0].mxu0
    %v372 = vpop.f32.mrb[0].mxu0
    %v373 = vpop.f32.mrb[0].mxu0
    %374 = vdwg.mxu0
    %v375 = vadd.f32 %v272, %v370
    %v376 = vmul.f32 %v375, %v316
    %v377 = vtanh.pop %v376
    %v378 = vmul.f32 %v377, 0.5
    %v379 = vadd.f32 %v378, 0.5
    %v380 = vsel %vm315, %v377, %v379
    %v381 = vmul.f32 %v380, 0.0
    %383 = vrot.lane.b32.xlu0 %v380, 64
    %v384 = vpop.permute.xlu0 %383
    %v386 = vmul.f32 %v380, %v384
    %388 = vrot.lane.b32.xlu0 %v386, 32
    %v389 = vpop.permute.xlu0 %388
    %v391 = vadd.f32 %v381, %v389
    %v392 = vtanh.pop %v391
    %394 = vrot.lane.b32.xlu0 %v392, 64
    %v395 = vpop.permute.xlu0 %394
    %v397 = vmul.f32 %v380, %v395
    %v398 = vsel %vm319, %v397, 0.0
    %400 = vrot.lane.b32.xlu0 %v398, 32
    %v401 = vpop.permute.xlu0 %400
    %v403 = vsel %vm112, %v401, 0.0
    %404 = vadd.xlane.f32.xlu0 %v403
    %v405 = vpop.xlane.xlu0 %404
    %v406 = vrot.slane %v405, 4
    %v407 = vadd.f32 %v405, %v406
    %v408 = vrot.slane %v407, 2
    %v409 = vadd.f32 %v407, %v408
    %v410 = vrot.slane %v409, 1
    %v411 = vadd.f32 %v409, %v410
    %v412 = vmul.f32 %v398, %v398
    %414 = vrot.lane.b32.xlu0 %v412, 32
    %v415 = vpop.permute.xlu0 %414
    %v417 = vsel %vm112, %v415, 0.0
    %418 = vadd.xlane.f32.xlu0 %v417
    %v419 = vpop.xlane.xlu0 %418
    %v420 = vrot.slane %v419, 4
    %v421 = vadd.f32 %v419, %v420
    %v422 = vrot.slane %v421, 2
    %v423 = vadd.f32 %v421, %v422
    %v424 = vrot.slane %v423, 1
    %v425 = vadd.f32 %v423, %v424
    %v426 = vmul.f32 %v411, 0.0078125
    %v427 = vmul.f32 %v425, 0.0078125
    %v428 = vmul.f32 %v426, %v426
    %v429 = vsub.f32 %v427, %v428
    %v430 = vadd.f32 %v429, 1e-05
    %v431 = vrsqrt.pop %v430
    %s432 = sld [smem:[#allocation2]]
    %v433 = vstv %s432
    %v434 = vmul.f32 %v431, %v433
    %v435 = vsub.f32 %v397, %v426
    %v436 = vmul.f32 %v435, %v434
    %s437 = sld [smem:[#allocation4]]
    %v438 = vstv %s437
    %v439 = vadd.f32 %v436, %v438
    %v440 = vpack.c.bf16 %v439, %v439
    %v442 = vlaneseq
    %v443 = vshrl.u32 %v442, 7
    %v444 = vsub.s32 0, %v443
    %v445 = vrot.slane %v310, %v444
    %448 = vrot.lane.b32.xlu0 %v440, 32
    %v449 = vpop.permute.xlu0 %448
    %v454 = vunpack.c.l.b16 %v306
    %v455 = vunpack.c.l.b16 %v307
    %v456 = vunpack.c.l.b16 %v308
    %v457 = vunpack.c.l.b16 %v309
    %v458 = vpack.c.b16 %v455, %v454
    %v459 = vpack.c.b16 %v457, %v456
    %v463 = vsel %vm112, %v449, 0
    %465 = vmatprep.subr.bf16.mxu0 0
    %466 = vmatpush1.bf16.msra.mxu0 %v458
    %467 = vmatprep.subr.bf16.mxu0 0
    %468 = vmatpush1.bf16.msra.mxu0 %v459
    %469 = vmatprep.subr.bf16.mxu0 0
    %470 = vmatpush1.bf16.msra.mxu0 0
    %471 = vmatprep.subr.bf16.mxu0 0
    %472 = vmatpush1.bf16.msra.mxu0 0
    %473 = vmatprep.subr.bf16.mxu0 0
    %474 = vmatpush1.bf16.msra.mxu0 0
    %475 = vmatprep.subr.bf16.mxu0 0
    %476 = vmatpush1.bf16.msra.mxu0 0
    %477 = vmatprep.subr.bf16.mxu0 0
    %478 = vmatpush1.bf16.msra.mxu0 0
    %479 = vmatprep.subr.bf16.mxu0 0
    %480 = vmatpush1.bf16.msra.mxu0 0
    %481 = vmatprep.subr.bf16.mxu0 0
    %482 = vmatpush1.bf16.msra.mxu0 0
    %483 = vmatprep.subr.bf16.mxu0 0
    %484 = vmatpush1.bf16.msra.mxu0 0
    %485 = vmatprep.subr.bf16.mxu0 0
    %486 = vmatpush1.bf16.msra.mxu0 0
    %487 = vmatprep.subr.bf16.mxu0 0
    %488 = vmatpush1.bf16.msra.mxu0 0
    %489 = vmatprep.subr.bf16.mxu0 0
    %490 = vmatpush1.bf16.msra.mxu0 0
    %491 = vmatprep.subr.bf16.mxu0 0
    %492 = vmatpush1.bf16.msra.mxu0 0
    %493 = vmatprep.subr.bf16.mxu0 0
    %494 = vmatpush1.bf16.msra.mxu0 0
    %495 = vmatprep.subr.bf16.mxu0 0
    %496 = vmatpush1.bf16.msra.mxu0 0
    %497 = vmatprep.mubr.bf16.mxu0 0
    %498 = vmatmul.mubr.bf16.gmra.mrb[0].mxu0 %v463
    %v499 = vpop.f32.mrb[0].mxu0
    %v500 = vadd.f32 %v445, %v499
    %v501 = vpop.f32.mrb[0].mxu0
    %v502 = vpop.f32.mrb[0].mxu0
    %v503 = vpop.f32.mrb[0].mxu0
    %504 = vdwg.mxu0
    %505 = vst [vmem:[%s10] sm:$0xff] %v500
    %v506 = vpack.c.bf16 %v397, %v397
    %508 = vrot.lane.b32.xlu0 %v506, 32
    %v509 = vpop.permute.xlu0 %508
    %v511 = vsel %vm112, %v509, 0
    %513 = vmatprep.subr.bf16.mxu0 0
    %514 = vmatpush1.bf16.msra.mxu0 %v328
    %515 = vmatprep.subr.bf16.mxu0 0
    %516 = vmatpush1.bf16.msra.mxu0 %v329
    %517 = vmatprep.subr.bf16.mxu0 0
    %518 = vmatpush1.bf16.msra.mxu0 0
    %519 = vmatprep.subr.bf16.mxu0 0
    %520 = vmatpush1.bf16.msra.mxu0 0
    %521 = vmatprep.subr.bf16.mxu0 0
    %522 = vmatpush1.bf16.msra.mxu0 0
    %523 = vmatprep.subr.bf16.mxu0 0
    %524 = vmatpush1.bf16.msra.mxu0 0
    %525 = vmatprep.subr.bf16.mxu0 0
    %526 = vmatpush1.bf16.msra.mxu0 0
    %527 = vmatprep.subr.bf16.mxu0 0
    %528 = vmatpush1.bf16.msra.mxu0 0
    %529 = vmatprep.subr.bf16.mxu0 0
    %530 = vmatpush1.bf16.msra.mxu0 0
    %531 = vmatprep.subr.bf16.mxu0 0
    %532 = vmatpush1.bf16.msra.mxu0 0
    %533 = vmatprep.subr.bf16.mxu0 0
    %534 = vmatpush1.bf16.msra.mxu0 0
    %535 = vmatprep.subr.bf16.mxu0 0
    %536 = vmatpush1.bf16.msra.mxu0 0
    %537 = vmatprep.subr.bf16.mxu0 0
    %538 = vmatpush1.bf16.msra.mxu0 0
    %539 = vmatprep.subr.bf16.mxu0 0
    %540 = vmatpush1.bf16.msra.mxu0 0
    %541 = vmatprep.subr.bf16.mxu0 0
    %542 = vmatpush1.bf16.msra.mxu0 0
    %543 = vmatprep.subr.bf16.mxu0 0
    %544 = vmatpush1.bf16.msra.mxu0 0
    %545 = vmatprep.mubr.bf16.mxu0 0
    %546 = vmatmul.mubr.bf16.gmra.mrb[0].mxu0 %v511
    %v547 = vpop.f32.mrb[0].mxu0
    %v548 = vadd.f32 0.0, %v547
    %v549 = vpop.f32.mrb[0].mxu0
    %v550 = vpop.f32.mrb[0].mxu0
    %v551 = vpop.f32.mrb[0].mxu0
    %552 = vdwg.mxu0
    %v553 = vadd.f32 %v275, %v548
    %v554 = vmul.f32 %v553, %v316
    %v555 = vtanh.pop %v554
    %v556 = vmul.f32 %v555, 0.5
    %v557 = vadd.f32 %v556, 0.5
    %v558 = vsel %vm315, %v555, %v557
    %v559 = vmul.f32 %v558, %v391
    %561 = vrot.lane.b32.xlu0 %v558, 64
    %v562 = vpop.permute.xlu0 %561
    %v564 = vmul.f32 %v558, %v562
    %566 = vrot.lane.b32.xlu0 %v564, 32
    %v567 = vpop.permute.xlu0 %566
    %v569 = vadd.f32 %v559, %v567
    %v570 = vtanh.pop %v569
    %572 = vrot.lane.b32.xlu0 %v570, 64
    %v573 = vpop.permute.xlu0 %572
    %v575 = vmul.f32 %v558, %v573
    %v576 = vsel %vm319, %v575, 0.0
    %578 = vrot.lane.b32.xlu0 %v576, 32
    %v579 = vpop.permute.xlu0 %578
    %v581 = vsel %vm112, %v579, 0.0
    %582 = vadd.xlane.f32.xlu0 %v581
    %v583 = vpop.xlane.xlu0 %582
    %v584 = vrot.slane %v583, 4
    %v585 = vadd.f32 %v583, %v584
    %v586 = vrot.slane %v585, 2
    %v587 = vadd.f32 %v585, %v586
    %v588 = vrot.slane %v587, 1
    %v589 = vadd.f32 %v587, %v588
    %v590 = vmul.f32 %v576, %v576
    %592 = vrot.lane.b32.xlu0 %v590, 32
    %v593 = vpop.permute.xlu0 %592
    %v595 = vsel %vm112, %v593, 0.0
    %596 = vadd.xlane.f32.xlu0 %v595
    %v597 = vpop.xlane.xlu0 %596
    %v598 = vrot.slane %v597, 4
    %v599 = vadd.f32 %v597, %v598
    %v600 = vrot.slane %v599, 2
    %v601 = vadd.f32 %v599, %v600
    %v602 = vrot.slane %v601, 1
    %v603 = vadd.f32 %v601, %v602
    %v604 = vmul.f32 %v589, 0.0078125
    %v605 = vmul.f32 %v603, 0.0078125
    %v606 = vmul.f32 %v604, %v604
    %v607 = vsub.f32 %v605, %v606
    %v608 = vadd.f32 %v607, 1e-05
    %v609 = vrsqrt.pop %v608
    %s610 = sld [smem:[#allocation2 + $0x1]]
    %v611 = vstv %s610
    %v612 = vmul.f32 %v609, %v611
    %v613 = vsub.f32 %v575, %v604
    %v614 = vmul.f32 %v613, %v612
    %s615 = sld [smem:[#allocation4 + $0x1]]
    %v616 = vstv %s615
    %v617 = vadd.f32 %v614, %v616
    %v618 = vpack.c.bf16 %v617, %v617
    %620 = vrot.lane.b32.xlu0 %v618, 32
    %v621 = vpop.permute.xlu0 %620
    %v623 = vsel %vm112, %v621, 0
    %625 = vmatprep.subr.bf16.mxu0 0
    %626 = vmatpush1.bf16.msra.mxu0 %v458
    %627 = vmatprep.subr.bf16.mxu0 0
    %628 = vmatpush1.bf16.msra.mxu0 %v459
    %629 = vmatprep.subr.bf16.mxu0 0
    %630 = vmatpush1.bf16.msra.mxu0 0
    %631 = vmatprep.subr.bf16.mxu0 0
    %632 = vmatpush1.bf16.msra.mxu0 0
    %633 = vmatprep.subr.bf16.mxu0 0
    %634 = vmatpush1.bf16.msra.mxu0 0
    %635 = vmatprep.subr.bf16.mxu0 0
    %636 = vmatpush1.bf16.msra.mxu0 0
    %637 = vmatprep.subr.bf16.mxu0 0
    %638 = vmatpush1.bf16.msra.mxu0 0
    %639 = vmatprep.subr.bf16.mxu0 0
    %640 = vmatpush1.bf16.msra.mxu0 0
    %641 = vmatprep.subr.bf16.mxu0 0
    %642 = vmatpush1.bf16.msra.mxu0 0
    %643 = vmatprep.subr.bf16.mxu0 0
    %644 = vmatpush1.bf16.msra.mxu0 0
    %645 = vmatprep.subr.bf16.mxu0 0
    %646 = vmatpush1.bf16.msra.mxu0 0
    %647 = vmatprep.subr.bf16.mxu0 0
    %648 = vmatpush1.bf16.msra.mxu0 0
    %649 = vmatprep.subr.bf16.mxu0 0
    %650 = vmatpush1.bf16.msra.mxu0 0
    %651 = vmatprep.subr.bf16.mxu0 0
    %652 = vmatpush1.bf16.msra.mxu0 0
    %653 = vmatprep.subr.bf16.mxu0 0
    %654 = vmatpush1.bf16.msra.mxu0 0
    %655 = vmatprep.subr.bf16.mxu0 0
    %656 = vmatpush1.bf16.msra.mxu0 0
    %657 = vmatprep.mubr.bf16.mxu0 0
    %658 = vmatmul.mubr.bf16.gmra.mrb[0].mxu0 %v623
    %v659 = vpop.f32.mrb[0].mxu0
    %v660 = vadd.f32 %v445, %v659
    %v661 = vpop.f32.mrb[0].mxu0
    %v662 = vpop.f32.mrb[0].mxu0
    %v663 = vpop.f32.mrb[0].mxu0
    %664 = vdwg.mxu0
    %665 = vst [vmem:[%s10 + $0x8] sm:$0xff] %v660
    %v666 = vpack.c.bf16 %v575, %v575
    %668 = vrot.lane.b32.xlu0 %v666, 32
    %v669 = vpop.permute.xlu0 %668
    %v671 = vsel %vm112, %v669, 0
    %673 = vmatprep.subr.bf16.mxu0 0
    %674 = vmatpush1.bf16.msra.mxu0 %v328
    %675 = vmatprep.subr.bf16.mxu0 0
    %676 = vmatpush1.bf16.msra.mxu0 %v329
    %677 = vmatprep.subr.bf16.mxu0 0
    %678 = vmatpush1.bf16.msra.mxu0 0
    %679 = vmatprep.subr.bf16.mxu0 0
    %680 = vmatpush1.bf16.msra.mxu0 0
    %681 = vmatprep.subr.bf16.mxu0 0
    %682 = vmatpush1.bf16.msra.mxu0 0
    %683 = vmatprep.subr.bf16.mxu0 0
    %684 = vmatpush1.bf16.msra.mxu0 0
    %685 = vmatprep.subr.bf16.mxu0 0
    %686 = vmatpush1.bf16.msra.mxu0 0
    %687 = vmatprep.subr.bf16.mxu0 0
    %688 = vmatpush1.bf16.msra.mxu0 0
    %689 = vmatprep.subr.bf16.mxu0 0
    %690 = vmatpush1.bf16.msra.mxu0 0
    %691 = vmatprep.subr.bf16.mxu0 0
    %692 = vmatpush1.bf16.msra.mxu0 0
    %693 = vmatprep.subr.bf16.mxu0 0
    %694 = vmatpush1.bf16.msra.mxu0 0
    %695 = vmatprep.subr.bf16.mxu0 0
    %696 = vmatpush1.bf16.msra.mxu0 0
    %697 = vmatprep.subr.bf16.mxu0 0
    %698 = vmatpush1.bf16.msra.mxu0 0
    %699 = vmatprep.subr.bf16.mxu0 0
    %700 = vmatpush1.bf16.msra.mxu0 0
    %701 = vmatprep.subr.bf16.mxu0 0
    %702 = vmatpush1.bf16.msra.mxu0 0
    %703 = vmatprep.subr.bf16.mxu0 0
    %704 = vmatpush1.bf16.msra.mxu0 0
    %705 = vmatprep.mubr.bf16.mxu0 0
    %706 = vmatmul.mubr.bf16.gmra.mrb[0].mxu0 %v671
    %v707 = vpop.f32.mrb[0].mxu0
    %v708 = vadd.f32 0.0, %v707
    %v709 = vpop.f32.mrb[0].mxu0
    %v710 = vpop.f32.mrb[0].mxu0
    %v711 = vpop.f32.mrb[0].mxu0
    %712 = vdwg.mxu0
    %v713 = vadd.f32 %v280, %v708
    %v714 = vmul.f32 %v713, %v316
    %v715 = vtanh.pop %v714
    %v716 = vmul.f32 %v715, 0.5
    %v717 = vadd.f32 %v716, 0.5
    %v718 = vsel %vm315, %v715, %v717
    %v719 = vmul.f32 %v718, %v569
    %721 = vrot.lane.b32.xlu0 %v718, 64
    %v722 = vpop.permute.xlu0 %721
    %v724 = vmul.f32 %v718, %v722
    %726 = vrot.lane.b32.xlu0 %v724, 32
    %v727 = vpop.permute.xlu0 %726
    %v729 = vadd.f32 %v719, %v727
    %v730 = vtanh.pop %v729
    %732 = vrot.lane.b32.xlu0 %v730, 64
    %v733 = vpop.permute.xlu0 %732
    %v735 = vmul.f32 %v718, %v733
    %v736 = vsel %vm319, %v735, 0.0
    %738 = vrot.lane.b32.xlu0 %v736, 32
    %v739 = vpop.permute.xlu0 %738
    %v741 = vsel %vm112, %v739, 0.0
    %742 = vadd.xlane.f32.xlu0 %v741
    %v743 = vpop.xlane.xlu0 %742
    %v744 = vrot.slane %v743, 4
    %v745 = vadd.f32 %v743, %v744
    %v746 = vrot.slane %v745, 2
    %v747 = vadd.f32 %v745, %v746
    %v748 = vrot.slane %v747, 1
    %v749 = vadd.f32 %v747, %v748
    %v750 = vmul.f32 %v736, %v736
    %752 = vrot.lane.b32.xlu0 %v750, 32
    %v753 = vpop.permute.xlu0 %752
    %v755 = vsel %vm112, %v753, 0.0
    %756 = vadd.xlane.f32.xlu0 %v755
    %v757 = vpop.xlane.xlu0 %756
    %v758 = vrot.slane %v757, 4
    %v759 = vadd.f32 %v757, %v758
    %v760 = vrot.slane %v759, 2
    %v761 = vadd.f32 %v759, %v760
    %v762 = vrot.slane %v761, 1
    %v763 = vadd.f32 %v761, %v762
    %v764 = vmul.f32 %v749, 0.0078125
    %v765 = vmul.f32 %v763, 0.0078125
    %v766 = vmul.f32 %v764, %v764
    %v767 = vsub.f32 %v765, %v766
    %v768 = vadd.f32 %v767, 1e-05
    %v769 = vrsqrt.pop %v768
    %s770 = sld [smem:[#allocation2 + $0x2]]
    %v771 = vstv %s770
    %v772 = vmul.f32 %v769, %v771
    %v773 = vsub.f32 %v735, %v764
    %v774 = vmul.f32 %v773, %v772
    %s775 = sld [smem:[#allocation4 + $0x2]]
    %v776 = vstv %s775
    %v777 = vadd.f32 %v774, %v776
    %v778 = vpack.c.bf16 %v777, %v777
    %780 = vrot.lane.b32.xlu0 %v778, 32
    %v781 = vpop.permute.xlu0 %780
    %v783 = vsel %vm112, %v781, 0
    %785 = vmatprep.subr.bf16.mxu0 0
    %786 = vmatpush1.bf16.msra.mxu0 %v458
    %787 = vmatprep.subr.bf16.mxu0 0
    %788 = vmatpush1.bf16.msra.mxu0 %v459
    %789 = vmatprep.subr.bf16.mxu0 0
    %790 = vmatpush1.bf16.msra.mxu0 0
    %791 = vmatprep.subr.bf16.mxu0 0
    %792 = vmatpush1.bf16.msra.mxu0 0
    %793 = vmatprep.subr.bf16.mxu0 0
    %794 = vmatpush1.bf16.msra.mxu0 0
    %795 = vmatprep.subr.bf16.mxu0 0
    %796 = vmatpush1.bf16.msra.mxu0 0
    %797 = vmatprep.subr.bf16.mxu0 0
    %798 = vmatpush1.bf16.msra.mxu0 0
    %799 = vmatprep.subr.bf16.mxu0 0
    %800 = vmatpush1.bf16.msra.mxu0 0
    %801 = vmatprep.subr.bf16.mxu0 0
    %802 = vmatpush1.bf16.msra.mxu0 0
    %803 = vmatprep.subr.bf16.mxu0 0
    %804 = vmatpush1.bf16.msra.mxu0 0
    %805 = vmatprep.subr.bf16.mxu0 0
    %806 = vmatpush1.bf16.msra.mxu0 0
    %807 = vmatprep.subr.bf16.mxu0 0
    %808 = vmatpush1.bf16.msra.mxu0 0
    %809 = vmatprep.subr.bf16.mxu0 0
    %810 = vmatpush1.bf16.msra.mxu0 0
    %811 = vmatprep.subr.bf16.mxu0 0
    %812 = vmatpush1.bf16.msra.mxu0 0
    %813 = vmatprep.subr.bf16.mxu0 0
    %814 = vmatpush1.bf16.msra.mxu0 0
    %815 = vmatprep.subr.bf16.mxu0 0
    %816 = vmatpush1.bf16.msra.mxu0 0
    %817 = vmatprep.mubr.bf16.mxu0 0
    %818 = vmatmul.mubr.bf16.gmra.mrb[0].mxu0 %v783
    %v819 = vpop.f32.mrb[0].mxu0
    %v820 = vadd.f32 %v445, %v819
    %v821 = vpop.f32.mrb[0].mxu0
    %v822 = vpop.f32.mrb[0].mxu0
    %v823 = vpop.f32.mrb[0].mxu0
    %824 = vdwg.mxu0
    %825 = vst [vmem:[%s10 + $0x10] sm:$0xff] %v820
    %v826 = vpack.c.bf16 %v735, %v735
    %828 = vrot.lane.b32.xlu0 %v826, 32
    %v829 = vpop.permute.xlu0 %828
    %v831 = vsel %vm112, %v829, 0
    %833 = vmatprep.subr.bf16.mxu0 0
    %834 = vmatpush1.bf16.msra.mxu0 %v328
    %835 = vmatprep.subr.bf16.mxu0 0
    %836 = vmatpush1.bf16.msra.mxu0 %v329
    %837 = vmatprep.subr.bf16.mxu0 0
    %838 = vmatpush1.bf16.msra.mxu0 0
    %839 = vmatprep.subr.bf16.mxu0 0
    %840 = vmatpush1.bf16.msra.mxu0 0
    %841 = vmatprep.subr.bf16.mxu0 0
    %842 = vmatpush1.bf16.msra.mxu0 0
    %843 = vmatprep.subr.bf16.mxu0 0
    %844 = vmatpush1.bf16.msra.mxu0 0
    %845 = vmatprep.subr.bf16.mxu0 0
    %846 = vmatpush1.bf16.msra.mxu0 0
    %847 = vmatprep.subr.bf16.mxu0 0
    %848 = vmatpush1.bf16.msra.mxu0 0
    %849 = vmatprep.subr.bf16.mxu0 0
    %850 = vmatpush1.bf16.msra.mxu0 0
    %851 = vmatprep.subr.bf16.mxu0 0
    %852 = vmatpush1.bf16.msra.mxu0 0
    %853 = vmatprep.subr.bf16.mxu0 0
    %854 = vmatpush1.bf16.msra.mxu0 0
    %855 = vmatprep.subr.bf16.mxu0 0
    %856 = vmatpush1.bf16.msra.mxu0 0
    %857 = vmatprep.subr.bf16.mxu0 0
    %858 = vmatpush1.bf16.msra.mxu0 0
    %859 = vmatprep.subr.bf16.mxu0 0
    %860 = vmatpush1.bf16.msra.mxu0 0
    %861 = vmatprep.subr.bf16.mxu0 0
    %862 = vmatpush1.bf16.msra.mxu0 0
    %863 = vmatprep.subr.bf16.mxu0 0
    %864 = vmatpush1.bf16.msra.mxu0 0
    %865 = vmatprep.mubr.bf16.mxu0 0
    %866 = vmatmul.mubr.bf16.gmra.mrb[0].mxu0 %v831
    %v867 = vpop.f32.mrb[0].mxu0
    %v868 = vadd.f32 0.0, %v867
    %v869 = vpop.f32.mrb[0].mxu0
    %v870 = vpop.f32.mrb[0].mxu0
    %v871 = vpop.f32.mrb[0].mxu0
    %872 = vdwg.mxu0
    %v873 = vadd.f32 %v283, %v868
    %v874 = vmul.f32 %v873, %v316
    %v875 = vtanh.pop %v874
    %v876 = vmul.f32 %v875, 0.5
    %v877 = vadd.f32 %v876, 0.5
    %v878 = vsel %vm315, %v875, %v877
    %v879 = vmul.f32 %v878, %v729
    %881 = vrot.lane.b32.xlu0 %v878, 64
    %v882 = vpop.permute.xlu0 %881
    %v884 = vmul.f32 %v878, %v882
    %886 = vrot.lane.b32.xlu0 %v884, 32
    %v887 = vpop.permute.xlu0 %886
    %v889 = vadd.f32 %v879, %v887
    %v890 = vtanh.pop %v889
    %892 = vrot.lane.b32.xlu0 %v890, 64
    %v893 = vpop.permute.xlu0 %892
    %v895 = vmul.f32 %v878, %v893
    %v896 = vsel %vm319, %v895, 0.0
    %898 = vrot.lane.b32.xlu0 %v896, 32
    %v899 = vpop.permute.xlu0 %898
    %v901 = vsel %vm112, %v899, 0.0
    %902 = vadd.xlane.f32.xlu0 %v901
    %v903 = vpop.xlane.xlu0 %902
    %v904 = vrot.slane %v903, 4
    %v905 = vadd.f32 %v903, %v904
    %v906 = vrot.slane %v905, 2
    %v907 = vadd.f32 %v905, %v906
    %v908 = vrot.slane %v907, 1
    %v909 = vadd.f32 %v907, %v908
    %v910 = vmul.f32 %v896, %v896
    %912 = vrot.lane.b32.xlu0 %v910, 32
    %v913 = vpop.permute.xlu0 %912
    %v915 = vsel %vm112, %v913, 0.0
    %916 = vadd.xlane.f32.xlu0 %v915
    %v917 = vpop.xlane.xlu0 %916
    %v918 = vrot.slane %v917, 4
    %v919 = vadd.f32 %v917, %v918
    %v920 = vrot.slane %v919, 2
    %v921 = vadd.f32 %v919, %v920
    %v922 = vrot.slane %v921, 1
    %v923 = vadd.f32 %v921, %v922
    %v924 = vmul.f32 %v909, 0.0078125
    %v925 = vmul.f32 %v923, 0.0078125
    %v926 = vmul.f32 %v924, %v924
    %v927 = vsub.f32 %v925, %v926
    %v928 = vadd.f32 %v927, 1e-05
    %v929 = vrsqrt.pop %v928
    %s930 = sld [smem:[#allocation2 + $0x3]]
    %v931 = vstv %s930
    %v932 = vmul.f32 %v929, %v931
    %v933 = vsub.f32 %v895, %v924
    %v934 = vmul.f32 %v933, %v932
    %s935 = sld [smem:[#allocation4 + $0x3]]
    %v936 = vstv %s935
    %v937 = vadd.f32 %v934, %v936
    %v938 = vpack.c.bf16 %v937, %v937
    %940 = vrot.lane.b32.xlu0 %v938, 32
    %v941 = vpop.permute.xlu0 %940
    %v943 = vsel %vm112, %v941, 0
    %945 = vmatprep.subr.bf16.mxu0 0
    %946 = vmatpush1.bf16.msra.mxu0 %v458
    %947 = vmatprep.subr.bf16.mxu0 0
    %948 = vmatpush1.bf16.msra.mxu0 %v459
    %949 = vmatprep.subr.bf16.mxu0 0
    %950 = vmatpush1.bf16.msra.mxu0 0
    %951 = vmatprep.subr.bf16.mxu0 0
    %952 = vmatpush1.bf16.msra.mxu0 0
    %953 = vmatprep.subr.bf16.mxu0 0
    %954 = vmatpush1.bf16.msra.mxu0 0
    %955 = vmatprep.subr.bf16.mxu0 0
    %956 = vmatpush1.bf16.msra.mxu0 0
    %957 = vmatprep.subr.bf16.mxu0 0
    %958 = vmatpush1.bf16.msra.mxu0 0
    %959 = vmatprep.subr.bf16.mxu0 0
    %960 = vmatpush1.bf16.msra.mxu0 0
    %961 = vmatprep.subr.bf16.mxu0 0
    %962 = vmatpush1.bf16.msra.mxu0 0
    %963 = vmatprep.subr.bf16.mxu0 0
    %964 = vmatpush1.bf16.msra.mxu0 0
    %965 = vmatprep.subr.bf16.mxu0 0
    %966 = vmatpush1.bf16.msra.mxu0 0
    %967 = vmatprep.subr.bf16.mxu0 0
    %968 = vmatpush1.bf16.msra.mxu0 0
    %969 = vmatprep.subr.bf16.mxu0 0
    %970 = vmatpush1.bf16.msra.mxu0 0
    %971 = vmatprep.subr.bf16.mxu0 0
    %972 = vmatpush1.bf16.msra.mxu0 0
    %973 = vmatprep.subr.bf16.mxu0 0
    %974 = vmatpush1.bf16.msra.mxu0 0
    %975 = vmatprep.subr.bf16.mxu0 0
    %976 = vmatpush1.bf16.msra.mxu0 0
    %977 = vmatprep.mubr.bf16.mxu0 0
    %978 = vmatmul.mubr.bf16.gmra.mrb[0].mxu0 %v943
    %v979 = vpop.f32.mrb[0].mxu0
    %v980 = vadd.f32 %v445, %v979
    %v981 = vpop.f32.mrb[0].mxu0
    %v982 = vpop.f32.mrb[0].mxu0
    %v983 = vpop.f32.mrb[0].mxu0
    %984 = vdwg.mxu0
    %985 = vst [vmem:[%s10 + $0x18] sm:$0xff] %v980
    %v986 = vpack.c.bf16 %v895, %v895
    %988 = vrot.lane.b32.xlu0 %v986, 32
    %v989 = vpop.permute.xlu0 %988
    %v991 = vsel %vm112, %v989, 0
    %993 = vmatprep.subr.bf16.mxu0 0
    %994 = vmatpush1.bf16.msra.mxu0 %v328
    %995 = vmatprep.subr.bf16.mxu0 0
    %996 = vmatpush1.bf16.msra.mxu0 %v329
    %997 = vmatprep.subr.bf16.mxu0 0
    %998 = vmatpush1.bf16.msra.mxu0 0
    %999 = vmatprep.subr.bf16.mxu0 0
    %1000 = vmatpush1.bf16.msra.mxu0 0
    %1001 = vmatprep.subr.bf16.mxu0 0
    %1002 = vmatpush1.bf16.msra.mxu0 0
    %1003 = vmatprep.subr.bf16.mxu0 0
    %1004 = vmatpush1.bf16.msra.mxu0 0
    %1005 = vmatprep.subr.bf16.mxu0 0
    %1006 = vmatpush1.bf16.msra.mxu0 0
    %1007 = vmatprep.subr.bf16.mxu0 0
    %1008 = vmatpush1.bf16.msra.mxu0 0
    %1009 = vmatprep.subr.bf16.mxu0 0
    %1010 = vmatpush1.bf16.msra.mxu0 0
    %1011 = vmatprep.subr.bf16.mxu0 0
    %1012 = vmatpush1.bf16.msra.mxu0 0
    %1013 = vmatprep.subr.bf16.mxu0 0
    %1014 = vmatpush1.bf16.msra.mxu0 0
    %1015 = vmatprep.subr.bf16.mxu0 0
    %1016 = vmatpush1.bf16.msra.mxu0 0
    %1017 = vmatprep.subr.bf16.mxu0 0
    %1018 = vmatpush1.bf16.msra.mxu0 0
    %1019 = vmatprep.subr.bf16.mxu0 0
    %1020 = vmatpush1.bf16.msra.mxu0 0
    %1021 = vmatprep.subr.bf16.mxu0 0
    %1022 = vmatpush1.bf16.msra.mxu0 0
    %1023 = vmatprep.subr.bf16.mxu0 0
    %1024 = vmatpush1.bf16.msra.mxu0 0
    %1025 = vmatprep.mubr.bf16.mxu0 0
    %1026 = vmatmul.mubr.bf16.gmra.mrb[0].mxu0 %v991
    %v1027 = vpop.f32.mrb[0].mxu0
    %v1028 = vadd.f32 0.0, %v1027
    %v1029 = vpop.f32.mrb[0].mxu0
    %v1030 = vpop.f32.mrb[0].mxu0
    %v1031 = vpop.f32.mrb[0].mxu0
    %1032 = vdwg.mxu0
    %v1033 = vadd.f32 %v288, %v1028
    %v1034 = vmul.f32 %v1033, %v316
    %v1035 = vtanh.pop %v1034
    %v1036 = vmul.f32 %v1035, 0.5
    %v1037 = vadd.f32 %v1036, 0.5
    %v1038 = vsel %vm315, %v1035, %v1037
    %v1039 = vmul.f32 %v1038, %v889
    %1041 = vrot.lane.b32.xlu0 %v1038, 64
    %v1042 = vpop.permute.xlu0 %1041
    %v1044 = vmul.f32 %v1038, %v1042
    %1046 = vrot.lane.b32.xlu0 %v1044, 32
    %v1047 = vpop.permute.xlu0 %1046
    %v1049 = vadd.f32 %v1039, %v1047
    %v1050 = vtanh.pop %v1049
    %1052 = vrot.lane.b32.xlu0 %v1050, 64
    %v1053 = vpop.permute.xlu0 %1052
    %v1055 = vmul.f32 %v1038, %v1053
    %v1056 = vsel %vm319, %v1055, 0.0
    %1058 = vrot.lane.b32.xlu0 %v1056, 32
    %v1059 = vpop.permute.xlu0 %1058
    %v1061 = vsel %vm112, %v1059, 0.0
    %1062 = vadd.xlane.f32.xlu0 %v1061
    %v1063 = vpop.xlane.xlu0 %1062
    %v1064 = vrot.slane %v1063, 4
    %v1065 = vadd.f32 %v1063, %v1064
    %v1066 = vrot.slane %v1065, 2
    %v1067 = vadd.f32 %v1065, %v1066
    %v1068 = vrot.slane %v1067, 1
    %v1069 = vadd.f32 %v1067, %v1068
    %v1070 = vmul.f32 %v1056, %v1056
    %1072 = vrot.lane.b32.xlu0 %v1070, 32
    %v1073 = vpop.permute.xlu0 %1072
    %v1075 = vsel %vm112, %v1073, 0.0
    %1076 = vadd.xlane.f32.xlu0 %v1075
    %v1077 = vpop.xlane.xlu0 %1076
    %v1078 = vrot.slane %v1077, 4
    %v1079 = vadd.f32 %v1077, %v1078
    %v1080 = vrot.slane %v1079, 2
    %v1081 = vadd.f32 %v1079, %v1080
    %v1082 = vrot.slane %v1081, 1
    %v1083 = vadd.f32 %v1081, %v1082
    %v1084 = vmul.f32 %v1069, 0.0078125
    %v1085 = vmul.f32 %v1083, 0.0078125
    %v1086 = vmul.f32 %v1084, %v1084
    %v1087 = vsub.f32 %v1085, %v1086
    %v1088 = vadd.f32 %v1087, 1e-05
    %v1089 = vrsqrt.pop %v1088
    %s1090 = sld [smem:[#allocation2 + $0x4]]
    %v1091 = vstv %s1090
    %v1092 = vmul.f32 %v1089, %v1091
    %v1093 = vsub.f32 %v1055, %v1084
    %v1094 = vmul.f32 %v1093, %v1092
    %s1095 = sld [smem:[#allocation4 + $0x4]]
    %v1096 = vstv %s1095
    %v1097 = vadd.f32 %v1094, %v1096
    %v1098 = vpack.c.bf16 %v1097, %v1097
    %1100 = vrot.lane.b32.xlu0 %v1098, 32
    %v1101 = vpop.permute.xlu0 %1100
    %v1103 = vsel %vm112, %v1101, 0
    %1105 = vmatprep.subr.bf16.mxu0 0
    %1106 = vmatpush1.bf16.msra.mxu0 %v458
    %1107 = vmatprep.subr.bf16.mxu0 0
    %1108 = vmatpush1.bf16.msra.mxu0 %v459
    %1109 = vmatprep.subr.bf16.mxu0 0
    %1110 = vmatpush1.bf16.msra.mxu0 0
    %1111 = vmatprep.subr.bf16.mxu0 0
    %1112 = vmatpush1.bf16.msra.mxu0 0
    %1113 = vmatprep.subr.bf16.mxu0 0
    %1114 = vmatpush1.bf16.msra.mxu0 0
    %1115 = vmatprep.subr.bf16.mxu0 0
    %1116 = vmatpush1.bf16.msra.mxu0 0
    %1117 = vmatprep.subr.bf16.mxu0 0
    %1118 = vmatpush1.bf16.msra.mxu0 0
    %1119 = vmatprep.subr.bf16.mxu0 0
    %1120 = vmatpush1.bf16.msra.mxu0 0
    %1121 = vmatprep.subr.bf16.mxu0 0
    %1122 = vmatpush1.bf16.msra.mxu0 0
    %1123 = vmatprep.subr.bf16.mxu0 0
    %1124 = vmatpush1.bf16.msra.mxu0 0
    %1125 = vmatprep.subr.bf16.mxu0 0
    %1126 = vmatpush1.bf16.msra.mxu0 0
    %1127 = vmatprep.subr.bf16.mxu0 0
    %1128 = vmatpush1.bf16.msra.mxu0 0
    %1129 = vmatprep.subr.bf16.mxu0 0
    %1130 = vmatpush1.bf16.msra.mxu0 0
    %1131 = vmatprep.subr.bf16.mxu0 0
    %1132 = vmatpush1.bf16.msra.mxu0 0
    %1133 = vmatprep.subr.bf16.mxu0 0
    %1134 = vmatpush1.bf16.msra.mxu0 0
    %1135 = vmatprep.subr.bf16.mxu0 0
    %1136 = vmatpush1.bf16.msra.mxu0 0
    %1137 = vmatprep.mubr.bf16.mxu0 0
    %1138 = vmatmul.mubr.bf16.gmra.mrb[0].mxu0 %v1103
    %v1139 = vpop.f32.mrb[0].mxu0
    %v1140 = vadd.f32 %v445, %v1139
    %v1141 = vpop.f32.mrb[0].mxu0
    %v1142 = vpop.f32.mrb[0].mxu0
    %v1143 = vpop.f32.mrb[0].mxu0
    %1144 = vdwg.mxu0
    %1145 = vst [vmem:[%s10 + $0x20] sm:$0xff] %v1140
    %v1146 = vpack.c.bf16 %v1055, %v1055
    %1148 = vrot.lane.b32.xlu0 %v1146, 32
    %v1149 = vpop.permute.xlu0 %1148
    %v1151 = vsel %vm112, %v1149, 0
    %1153 = vmatprep.subr.bf16.mxu0 0
    %1154 = vmatpush1.bf16.msra.mxu0 %v328
    %1155 = vmatprep.subr.bf16.mxu0 0
    %1156 = vmatpush1.bf16.msra.mxu0 %v329
    %1157 = vmatprep.subr.bf16.mxu0 0
    %1158 = vmatpush1.bf16.msra.mxu0 0
    %1159 = vmatprep.subr.bf16.mxu0 0
    %1160 = vmatpush1.bf16.msra.mxu0 0
    %1161 = vmatprep.subr.bf16.mxu0 0
    %1162 = vmatpush1.bf16.msra.mxu0 0
    %1163 = vmatprep.subr.bf16.mxu0 0
    %1164 = vmatpush1.bf16.msra.mxu0 0
    %1165 = vmatprep.subr.bf16.mxu0 0
    %1166 = vmatpush1.bf16.msra.mxu0 0
    %1167 = vmatprep.subr.bf16.mxu0 0
    %1168 = vmatpush1.bf16.msra.mxu0 0
    %1169 = vmatprep.subr.bf16.mxu0 0
    %1170 = vmatpush1.bf16.msra.mxu0 0
    %1171 = vmatprep.subr.bf16.mxu0 0
    %1172 = vmatpush1.bf16.msra.mxu0 0
    %1173 = vmatprep.subr.bf16.mxu0 0
    %1174 = vmatpush1.bf16.msra.mxu0 0
    %1175 = vmatprep.subr.bf16.mxu0 0
    %1176 = vmatpush1.bf16.msra.mxu0 0
    %1177 = vmatprep.subr.bf16.mxu0 0
    %1178 = vmatpush1.bf16.msra.mxu0 0
    %1179 = vmatprep.subr.bf16.mxu0 0
    %1180 = vmatpush1.bf16.msra.mxu0 0
    %1181 = vmatprep.subr.bf16.mxu0 0
    %1182 = vmatpush1.bf16.msra.mxu0 0
    %1183 = vmatprep.subr.bf16.mxu0 0
    %1184 = vmatpush1.bf16.msra.mxu0 0
    %1185 = vmatprep.mubr.bf16.mxu0 0
    %1186 = vmatmul.mubr.bf16.gmra.mrb[0].mxu0 %v1151
    %v1187 = vpop.f32.mrb[0].mxu0
    %v1188 = vadd.f32 0.0, %v1187
    %v1189 = vpop.f32.mrb[0].mxu0
    %v1190 = vpop.f32.mrb[0].mxu0
    %v1191 = vpop.f32.mrb[0].mxu0
    %1192 = vdwg.mxu0
    %v1193 = vadd.f32 %v291, %v1188
    %v1194 = vmul.f32 %v1193, %v316
    %v1195 = vtanh.pop %v1194
    %v1196 = vmul.f32 %v1195, 0.5
    %v1197 = vadd.f32 %v1196, 0.5
    %v1198 = vsel %vm315, %v1195, %v1197
    %v1199 = vmul.f32 %v1198, %v1049
    %1201 = vrot.lane.b32.xlu0 %v1198, 64
    %v1202 = vpop.permute.xlu0 %1201
    %v1204 = vmul.f32 %v1198, %v1202
    %1206 = vrot.lane.b32.xlu0 %v1204, 32
    %v1207 = vpop.permute.xlu0 %1206
    %v1209 = vadd.f32 %v1199, %v1207
    %v1210 = vtanh.pop %v1209
    %1212 = vrot.lane.b32.xlu0 %v1210, 64
    %v1213 = vpop.permute.xlu0 %1212
    %v1215 = vmul.f32 %v1198, %v1213
    %v1216 = vsel %vm319, %v1215, 0.0
    %1218 = vrot.lane.b32.xlu0 %v1216, 32
    %v1219 = vpop.permute.xlu0 %1218
    %v1221 = vsel %vm112, %v1219, 0.0
    %1222 = vadd.xlane.f32.xlu0 %v1221
    %v1223 = vpop.xlane.xlu0 %1222
    %v1224 = vrot.slane %v1223, 4
    %v1225 = vadd.f32 %v1223, %v1224
    %v1226 = vrot.slane %v1225, 2
    %v1227 = vadd.f32 %v1225, %v1226
    %v1228 = vrot.slane %v1227, 1
    %v1229 = vadd.f32 %v1227, %v1228
    %v1230 = vmul.f32 %v1216, %v1216
    %1232 = vrot.lane.b32.xlu0 %v1230, 32
    %v1233 = vpop.permute.xlu0 %1232
    %v1235 = vsel %vm112, %v1233, 0.0
    %1236 = vadd.xlane.f32.xlu0 %v1235
    %v1237 = vpop.xlane.xlu0 %1236
    %v1238 = vrot.slane %v1237, 4
    %v1239 = vadd.f32 %v1237, %v1238
    %v1240 = vrot.slane %v1239, 2
    %v1241 = vadd.f32 %v1239, %v1240
    %v1242 = vrot.slane %v1241, 1
    %v1243 = vadd.f32 %v1241, %v1242
    %v1244 = vmul.f32 %v1229, 0.0078125
    %v1245 = vmul.f32 %v1243, 0.0078125
    %v1246 = vmul.f32 %v1244, %v1244
    %v1247 = vsub.f32 %v1245, %v1246
    %v1248 = vadd.f32 %v1247, 1e-05
    %v1249 = vrsqrt.pop %v1248
    %s1250 = sld [smem:[#allocation2 + $0x5]]
    %v1251 = vstv %s1250
    %v1252 = vmul.f32 %v1249, %v1251
    %v1253 = vsub.f32 %v1215, %v1244
    %v1254 = vmul.f32 %v1253, %v1252
    %s1255 = sld [smem:[#allocation4 + $0x5]]
    %v1256 = vstv %s1255
    %v1257 = vadd.f32 %v1254, %v1256
    %v1258 = vpack.c.bf16 %v1257, %v1257
    %1260 = vrot.lane.b32.xlu0 %v1258, 32
    %v1261 = vpop.permute.xlu0 %1260
    %v1263 = vsel %vm112, %v1261, 0
    %1265 = vmatprep.subr.bf16.mxu0 0
    %1266 = vmatpush1.bf16.msra.mxu0 %v458
    %1267 = vmatprep.subr.bf16.mxu0 0
    %1268 = vmatpush1.bf16.msra.mxu0 %v459
    %1269 = vmatprep.subr.bf16.mxu0 0
    %1270 = vmatpush1.bf16.msra.mxu0 0
    %1271 = vmatprep.subr.bf16.mxu0 0
    %1272 = vmatpush1.bf16.msra.mxu0 0
    %1273 = vmatprep.subr.bf16.mxu0 0
    %1274 = vmatpush1.bf16.msra.mxu0 0
    %1275 = vmatprep.subr.bf16.mxu0 0
    %1276 = vmatpush1.bf16.msra.mxu0 0
    %1277 = vmatprep.subr.bf16.mxu0 0
    %1278 = vmatpush1.bf16.msra.mxu0 0
    %1279 = vmatprep.subr.bf16.mxu0 0
    %1280 = vmatpush1.bf16.msra.mxu0 0
    %1281 = vmatprep.subr.bf16.mxu0 0
    %1282 = vmatpush1.bf16.msra.mxu0 0
    %1283 = vmatprep.subr.bf16.mxu0 0
    %1284 = vmatpush1.bf16.msra.mxu0 0
    %1285 = vmatprep.subr.bf16.mxu0 0
    %1286 = vmatpush1.bf16.msra.mxu0 0
    %1287 = vmatprep.subr.bf16.mxu0 0
    %1288 = vmatpush1.bf16.msra.mxu0 0
    %1289 = vmatprep.subr.bf16.mxu0 0
    %1290 = vmatpush1.bf16.msra.mxu0 0
    %1291 = vmatprep.subr.bf16.mxu0 0
    %1292 = vmatpush1.bf16.msra.mxu0 0
    %1293 = vmatprep.subr.bf16.mxu0 0
    %1294 = vmatpush1.bf16.msra.mxu0 0
    %1295 = vmatprep.subr.bf16.mxu0 0
    %1296 = vmatpush1.bf16.msra.mxu0 0
    %1297 = vmatprep.mubr.bf16.mxu0 0
    %1298 = vmatmul.mubr.bf16.gmra.mrb[0].mxu0 %v1263
    %v1299 = vpop.f32.mrb[0].mxu0
    %v1300 = vadd.f32 %v445, %v1299
    %v1301 = vpop.f32.mrb[0].mxu0
    %v1302 = vpop.f32.mrb[0].mxu0
    %v1303 = vpop.f32.mrb[0].mxu0
    %1304 = vdwg.mxu0
    %1305 = vst [vmem:[%s10 + $0x28] sm:$0xff] %v1300
    %v1306 = vpack.c.bf16 %v1215, %v1215
    %1308 = vrot.lane.b32.xlu0 %v1306, 32
    %v1309 = vpop.permute.xlu0 %1308
    %v1311 = vsel %vm112, %v1309, 0
    %1313 = vmatprep.subr.bf16.mxu0 0
    %1314 = vmatpush1.bf16.msra.mxu0 %v328
    %1315 = vmatprep.subr.bf16.mxu0 0
    %1316 = vmatpush1.bf16.msra.mxu0 %v329
    %1317 = vmatprep.subr.bf16.mxu0 0
    %1318 = vmatpush1.bf16.msra.mxu0 0
    %1319 = vmatprep.subr.bf16.mxu0 0
    %1320 = vmatpush1.bf16.msra.mxu0 0
    %1321 = vmatprep.subr.bf16.mxu0 0
    %1322 = vmatpush1.bf16.msra.mxu0 0
    %1323 = vmatprep.subr.bf16.mxu0 0
    %1324 = vmatpush1.bf16.msra.mxu0 0
    %1325 = vmatprep.subr.bf16.mxu0 0
    %1326 = vmatpush1.bf16.msra.mxu0 0
    %1327 = vmatprep.subr.bf16.mxu0 0
    %1328 = vmatpush1.bf16.msra.mxu0 0
    %1329 = vmatprep.subr.bf16.mxu0 0
    %1330 = vmatpush1.bf16.msra.mxu0 0
    %1331 = vmatprep.subr.bf16.mxu0 0
    %1332 = vmatpush1.bf16.msra.mxu0 0
    %1333 = vmatprep.subr.bf16.mxu0 0
    %1334 = vmatpush1.bf16.msra.mxu0 0
    %1335 = vmatprep.subr.bf16.mxu0 0
    %1336 = vmatpush1.bf16.msra.mxu0 0
    %1337 = vmatprep.subr.bf16.mxu0 0
    %1338 = vmatpush1.bf16.msra.mxu0 0
    %1339 = vmatprep.subr.bf16.mxu0 0
    %1340 = vmatpush1.bf16.msra.mxu0 0
    %1341 = vmatprep.subr.bf16.mxu0 0
    %1342 = vmatpush1.bf16.msra.mxu0 0
    %1343 = vmatprep.subr.bf16.mxu0 0
    %1344 = vmatpush1.bf16.msra.mxu0 0
    %1345 = vmatprep.mubr.bf16.mxu0 0
    %1346 = vmatmul.mubr.bf16.gmra.mrb[0].mxu0 %v1311
    %v1347 = vpop.f32.mrb[0].mxu0
    %v1348 = vadd.f32 0.0, %v1347
    %v1349 = vpop.f32.mrb[0].mxu0
    %v1350 = vpop.f32.mrb[0].mxu0
    %v1351 = vpop.f32.mrb[0].mxu0
    %1352 = vdwg.mxu0
    %v1353 = vadd.f32 %v296, %v1348
    %v1354 = vmul.f32 %v1353, %v316
    %v1355 = vtanh.pop %v1354
    %v1356 = vmul.f32 %v1355, 0.5
    %v1357 = vadd.f32 %v1356, 0.5
    %v1358 = vsel %vm315, %v1355, %v1357
    %v1359 = vmul.f32 %v1358, %v1209
    %1361 = vrot.lane.b32.xlu0 %v1358, 64
    %v1362 = vpop.permute.xlu0 %1361
    %v1364 = vmul.f32 %v1358, %v1362
    %1366 = vrot.lane.b32.xlu0 %v1364, 32
    %v1367 = vpop.permute.xlu0 %1366
    %v1369 = vadd.f32 %v1359, %v1367
    %v1370 = vtanh.pop %v1369
    %1372 = vrot.lane.b32.xlu0 %v1370, 64
    %v1373 = vpop.permute.xlu0 %1372
    %v1375 = vmul.f32 %v1358, %v1373
    %v1376 = vsel %vm319, %v1375, 0.0
    %1378 = vrot.lane.b32.xlu0 %v1376, 32
    %v1379 = vpop.permute.xlu0 %1378
    %v1381 = vsel %vm112, %v1379, 0.0
    %1382 = vadd.xlane.f32.xlu0 %v1381
    %v1383 = vpop.xlane.xlu0 %1382
    %v1384 = vrot.slane %v1383, 4
    %v1385 = vadd.f32 %v1383, %v1384
    %v1386 = vrot.slane %v1385, 2
    %v1387 = vadd.f32 %v1385, %v1386
    %v1388 = vrot.slane %v1387, 1
    %v1389 = vadd.f32 %v1387, %v1388
    %v1390 = vmul.f32 %v1376, %v1376
    %1392 = vrot.lane.b32.xlu0 %v1390, 32
    %v1393 = vpop.permute.xlu0 %1392
    %v1395 = vsel %vm112, %v1393, 0.0
    %1396 = vadd.xlane.f32.xlu0 %v1395
    %v1397 = vpop.xlane.xlu0 %1396
    %v1398 = vrot.slane %v1397, 4
    %v1399 = vadd.f32 %v1397, %v1398
    %v1400 = vrot.slane %v1399, 2
    %v1401 = vadd.f32 %v1399, %v1400
    %v1402 = vrot.slane %v1401, 1
    %v1403 = vadd.f32 %v1401, %v1402
    %v1404 = vmul.f32 %v1389, 0.0078125
    %v1405 = vmul.f32 %v1403, 0.0078125
    %v1406 = vmul.f32 %v1404, %v1404
    %v1407 = vsub.f32 %v1405, %v1406
    %v1408 = vadd.f32 %v1407, 1e-05
    %v1409 = vrsqrt.pop %v1408
    %s1410 = sld [smem:[#allocation2 + $0x6]]
    %v1411 = vstv %s1410
    %v1412 = vmul.f32 %v1409, %v1411
    %v1413 = vsub.f32 %v1375, %v1404
    %v1414 = vmul.f32 %v1413, %v1412
    %s1415 = sld [smem:[#allocation4 + $0x6]]
    %v1416 = vstv %s1415
    %v1417 = vadd.f32 %v1414, %v1416
    %v1418 = vpack.c.bf16 %v1417, %v1417
    %1420 = vrot.lane.b32.xlu0 %v1418, 32
    %v1421 = vpop.permute.xlu0 %1420
    %v1423 = vsel %vm112, %v1421, 0
    %1425 = vmatprep.subr.bf16.mxu0 0
    %1426 = vmatpush1.bf16.msra.mxu0 %v458
    %1427 = vmatprep.subr.bf16.mxu0 0
    %1428 = vmatpush1.bf16.msra.mxu0 %v459
    %1429 = vmatprep.subr.bf16.mxu0 0
    %1430 = vmatpush1.bf16.msra.mxu0 0
    %1431 = vmatprep.subr.bf16.mxu0 0
    %1432 = vmatpush1.bf16.msra.mxu0 0
    %1433 = vmatprep.subr.bf16.mxu0 0
    %1434 = vmatpush1.bf16.msra.mxu0 0
    %1435 = vmatprep.subr.bf16.mxu0 0
    %1436 = vmatpush1.bf16.msra.mxu0 0
    %1437 = vmatprep.subr.bf16.mxu0 0
    %1438 = vmatpush1.bf16.msra.mxu0 0
    %1439 = vmatprep.subr.bf16.mxu0 0
    %1440 = vmatpush1.bf16.msra.mxu0 0
    %1441 = vmatprep.subr.bf16.mxu0 0
    %1442 = vmatpush1.bf16.msra.mxu0 0
    %1443 = vmatprep.subr.bf16.mxu0 0
    %1444 = vmatpush1.bf16.msra.mxu0 0
    %1445 = vmatprep.subr.bf16.mxu0 0
    %1446 = vmatpush1.bf16.msra.mxu0 0
    %1447 = vmatprep.subr.bf16.mxu0 0
    %1448 = vmatpush1.bf16.msra.mxu0 0
    %1449 = vmatprep.subr.bf16.mxu0 0
    %1450 = vmatpush1.bf16.msra.mxu0 0
    %1451 = vmatprep.subr.bf16.mxu0 0
    %1452 = vmatpush1.bf16.msra.mxu0 0
    %1453 = vmatprep.subr.bf16.mxu0 0
    %1454 = vmatpush1.bf16.msra.mxu0 0
    %1455 = vmatprep.subr.bf16.mxu0 0
    %1456 = vmatpush1.bf16.msra.mxu0 0
    %1457 = vmatprep.mubr.bf16.mxu0 0
    %1458 = vmatmul.mubr.bf16.gmra.mrb[0].mxu0 %v1423
    %v1459 = vpop.f32.mrb[0].mxu0
    %v1460 = vadd.f32 %v445, %v1459
    %v1461 = vpop.f32.mrb[0].mxu0
    %v1462 = vpop.f32.mrb[0].mxu0
    %v1463 = vpop.f32.mrb[0].mxu0
    %1464 = vdwg.mxu0
    %1465 = vst [vmem:[%s10 + $0x30] sm:$0xff] %v1460
    %v1466 = vpack.c.bf16 %v1375, %v1375
    %1468 = vrot.lane.b32.xlu0 %v1466, 32
    %v1469 = vpop.permute.xlu0 %1468
    %v1471 = vsel %vm112, %v1469, 0
    %1473 = vmatprep.subr.bf16.mxu0 0
    %1474 = vmatpush1.bf16.msra.mxu0 %v328
    %1475 = vmatprep.subr.bf16.mxu0 0
    %1476 = vmatpush1.bf16.msra.mxu0 %v329
    %1477 = vmatprep.subr.bf16.mxu0 0
    %1478 = vmatpush1.bf16.msra.mxu0 0
    %1479 = vmatprep.subr.bf16.mxu0 0
    %1480 = vmatpush1.bf16.msra.mxu0 0
    %1481 = vmatprep.subr.bf16.mxu0 0
    %1482 = vmatpush1.bf16.msra.mxu0 0
    %1483 = vmatprep.subr.bf16.mxu0 0
    %1484 = vmatpush1.bf16.msra.mxu0 0
    %1485 = vmatprep.subr.bf16.mxu0 0
    %1486 = vmatpush1.bf16.msra.mxu0 0
    %1487 = vmatprep.subr.bf16.mxu0 0
    %1488 = vmatpush1.bf16.msra.mxu0 0
    %1489 = vmatprep.subr.bf16.mxu0 0
    %1490 = vmatpush1.bf16.msra.mxu0 0
    %1491 = vmatprep.subr.bf16.mxu0 0
    %1492 = vmatpush1.bf16.msra.mxu0 0
    %1493 = vmatprep.subr.bf16.mxu0 0
    %1494 = vmatpush1.bf16.msra.mxu0 0
    %1495 = vmatprep.subr.bf16.mxu0 0
    %1496 = vmatpush1.bf16.msra.mxu0 0
    %1497 = vmatprep.subr.bf16.mxu0 0
    %1498 = vmatpush1.bf16.msra.mxu0 0
    %1499 = vmatprep.subr.bf16.mxu0 0
    %1500 = vmatpush1.bf16.msra.mxu0 0
    %1501 = vmatprep.subr.bf16.mxu0 0
    %1502 = vmatpush1.bf16.msra.mxu0 0
    %1503 = vmatprep.subr.bf16.mxu0 0
    %1504 = vmatpush1.bf16.msra.mxu0 0
    %1505 = vmatprep.mubr.bf16.mxu0 0
    %1506 = vmatmul.mubr.bf16.gmra.mrb[0].mxu0 %v1471
    %v1507 = vpop.f32.mrb[0].mxu0
    %v1508 = vadd.f32 0.0, %v1507
    %v1509 = vpop.f32.mrb[0].mxu0
    %v1510 = vpop.f32.mrb[0].mxu0
    %v1511 = vpop.f32.mrb[0].mxu0
    %1512 = vdwg.mxu0
    %v1513 = vadd.f32 %v299, %v1508
    %v1514 = vmul.f32 %v1513, %v316
    %v1515 = vtanh.pop %v1514
    %v1516 = vmul.f32 %v1515, 0.5
    %v1517 = vadd.f32 %v1516, 0.5
    %v1518 = vsel %vm315, %v1515, %v1517
    %v1519 = vmul.f32 %v1518, %v1369
    %1521 = vrot.lane.b32.xlu0 %v1518, 64
    %v1522 = vpop.permute.xlu0 %1521
    %v1524 = vmul.f32 %v1518, %v1522
    %1526 = vrot.lane.b32.xlu0 %v1524, 32
    %v1527 = vpop.permute.xlu0 %1526
    %v1529 = vadd.f32 %v1519, %v1527
    %v1530 = vtanh.pop %v1529
    %1532 = vrot.lane.b32.xlu0 %v1530, 64
    %v1533 = vpop.permute.xlu0 %1532
    %v1535 = vmul.f32 %v1518, %v1533
    %v1536 = vsel %vm319, %v1535, 0.0
    %1538 = vrot.lane.b32.xlu0 %v1536, 32
    %v1539 = vpop.permute.xlu0 %1538
    %v1541 = vsel %vm112, %v1539, 0.0
    %1542 = vadd.xlane.f32.xlu0 %v1541
    %v1543 = vpop.xlane.xlu0 %1542
    %v1544 = vrot.slane %v1543, 4
    %v1545 = vadd.f32 %v1543, %v1544
    %v1546 = vrot.slane %v1545, 2
    %v1547 = vadd.f32 %v1545, %v1546
    %v1548 = vrot.slane %v1547, 1
    %v1549 = vadd.f32 %v1547, %v1548
    %v1550 = vmul.f32 %v1536, %v1536
    %1552 = vrot.lane.b32.xlu0 %v1550, 32
    %v1553 = vpop.permute.xlu0 %1552
    %v1555 = vsel %vm112, %v1553, 0.0
    %1556 = vadd.xlane.f32.xlu0 %v1555
    %v1557 = vpop.xlane.xlu0 %1556
    %v1558 = vrot.slane %v1557, 4
    %v1559 = vadd.f32 %v1557, %v1558
    %v1560 = vrot.slane %v1559, 2
    %v1561 = vadd.f32 %v1559, %v1560
    %v1562 = vrot.slane %v1561, 1
    %v1563 = vadd.f32 %v1561, %v1562
    %v1564 = vmul.f32 %v1549, 0.0078125
    %v1565 = vmul.f32 %v1563, 0.0078125
    %v1566 = vmul.f32 %v1564, %v1564
    %v1567 = vsub.f32 %v1565, %v1566
    %v1568 = vadd.f32 %v1567, 1e-05
    %v1569 = vrsqrt.pop %v1568
    %s1570 = sld [smem:[#allocation2 + $0x7]]
    %v1571 = vstv %s1570
    %v1572 = vmul.f32 %v1569, %v1571
    %v1573 = vsub.f32 %v1535, %v1564
    %v1574 = vmul.f32 %v1573, %v1572
    %s1575 = sld [smem:[#allocation4 + $0x7]]
    %v1576 = vstv %s1575
    %v1577 = vadd.f32 %v1574, %v1576
    %v1578 = vpack.c.bf16 %v1577, %v1577
    %1580 = vrot.lane.b32.xlu0 %v1578, 32
    %v1581 = vpop.permute.xlu0 %1580
    %v1583 = vsel %vm112, %v1581, 0
    %1585 = vmatprep.subr.bf16.mxu0 0
    %1586 = vmatpush1.bf16.msra.mxu0 %v458
    %1587 = vmatprep.subr.bf16.mxu0 0
    %1588 = vmatpush1.bf16.msra.mxu0 %v459
    %1589 = vmatprep.subr.bf16.mxu0 0
    %1590 = vmatpush1.bf16.msra.mxu0 0
    %1591 = vmatprep.subr.bf16.mxu0 0
    %1592 = vmatpush1.bf16.msra.mxu0 0
    %1593 = vmatprep.subr.bf16.mxu0 0
    %1594 = vmatpush1.bf16.msra.mxu0 0
    %1595 = vmatprep.subr.bf16.mxu0 0
    %1596 = vmatpush1.bf16.msra.mxu0 0
    %1597 = vmatprep.subr.bf16.mxu0 0
    %1598 = vmatpush1.bf16.msra.mxu0 0
    %1599 = vmatprep.subr.bf16.mxu0 0
    %1600 = vmatpush1.bf16.msra.mxu0 0
    %1601 = vmatprep.subr.bf16.mxu0 0
    %1602 = vmatpush1.bf16.msra.mxu0 0
    %1603 = vmatprep.subr.bf16.mxu0 0
    %1604 = vmatpush1.bf16.msra.mxu0 0
    %1605 = vmatprep.subr.bf16.mxu0 0
    %1606 = vmatpush1.bf16.msra.mxu0 0
    %1607 = vmatprep.subr.bf16.mxu0 0
    %1608 = vmatpush1.bf16.msra.mxu0 0
    %1609 = vmatprep.subr.bf16.mxu0 0
    %1610 = vmatpush1.bf16.msra.mxu0 0
    %1611 = vmatprep.subr.bf16.mxu0 0
    %1612 = vmatpush1.bf16.msra.mxu0 0
    %1613 = vmatprep.subr.bf16.mxu0 0
    %1614 = vmatpush1.bf16.msra.mxu0 0
    %1615 = vmatprep.subr.bf16.mxu0 0
    %1616 = vmatpush1.bf16.msra.mxu0 0
    %1617 = vmatprep.mubr.bf16.mxu0 0
    %1618 = vmatmul.mubr.bf16.gmra.mrb[0].mxu0 %v1583
    %v1619 = vpop.f32.mrb[0].mxu0
    %v1620 = vadd.f32 %v445, %v1619
    %v1621 = vpop.f32.mrb[0].mxu0
    %v1622 = vpop.f32.mrb[0].mxu0
    %v1623 = vpop.f32.mrb[0].mxu0
    %1624 = vdwg.mxu0
    %1625 = vst [vmem:[%s10 + $0x38] sm:$0xff] %v1620
    // Predicated region
    $region50: #{timeseries_decoder_forward.1} parent=1 // pred_check
      _
    $region51: #{timeseries_decoder_forward.1} parent=1 // pred_check_branch
      %1627 = sbr.rel (0) target = $region53
    $region52: #{timeseries_decoder_forward.1} parent=1 // pred_region
      _
    $region53: #{timeseries_decoder_forward.1} parent=1 // pred_fallthru
      _
    // Predicated region
    $region54: #{timeseries_decoder_forward.1} parent=1 // pred_check
      _
    $region55: #{timeseries_decoder_forward.1} parent=1 // pred_check_branch
      %1629 = sbr.rel (0) target = $region57
    $region56: #{timeseries_decoder_forward.1} parent=1 // pred_region
      _
    $region57: #{timeseries_decoder_forward.1} parent=1 // pred_fallthru
      _
    %1630 = vsyncpa [#allocation3], 1
    %1631 = vsyncpa [#allocation5], 1

</llo_original>
